<compile_context>
chip_gen: v7x
topology: tpu7x:2x2x1
jax: 0.10.0
libtpu: 0.0.40
codegen_flags: <defaults>
</compile_context>

<pallas_src>
import math
from collections import Counter
from itertools import permutations

import numpy as np
import jax
import jax.numpy as jnp
from jax import lax
from jax.experimental import pallas as pl
from jax.experimental.pallas import tpu as pltpu


# ------------------------------ Pallas kernel ------------------------------ #

def _hypergcn_fused_kernel(feat_ref, w1_ref, b1_ref, p_ref, a_ref, ent_ref,
                           hw_ref, hb_ref, cw_ref, cb_ref, o_ref):
    n = feat_ref.shape[0]

    # ---- fc1: x1 = features @ W1 + b1 (bf16 MXU operands, f32 accumulation) ----
    x1 = jnp.dot(feat_ref[...].astype(jnp.bfloat16), w1_ref[...],
                 preferred_element_type=jnp.float32) + b1_ref[...]        # (N,H) f32

    # ---- fused num_L-layer hypergraph stack: h <- P @ (h @ W_l) + b_l ----
    # P (N,N) bf16 loaded into VMEM once and reused for every layer.
    p = p_ref[...]
    num_l = hw_ref.shape[0]

    def hyper_body(k, hcur):
        xw = jnp.dot(hcur.astype(jnp.bfloat16), hw_ref[k],
                     preferred_element_type=jnp.float32)
        return jnp.dot(p, xw.astype(jnp.bfloat16),
                       preferred_element_type=jnp.float32) + hb_ref[k]

    hyper_out = lax.fori_loop(0, num_l, hyper_body, x1, unroll=True)      # (N,H) f32

    # ---- cosine-similarity attention branch input (utterance_selector loop) ----
    # TODO(synk): epsilon handling differs slightly from torch (1e-6 added to the
    # product of norms there; rsqrt(|x|^2 + 1e-12) per row here).
    inv_nrm = lax.rsqrt(jnp.sum(x1 * x1, axis=-1, keepdims=True) + 1e-12)
    xn = (x1 * inv_nrm).astype(jnp.bfloat16)
    s = lax.dot_general(xn, xn, (((1,), (1,)), ((), ())),
                        preferred_element_type=jnp.float32)               # (N,N) cos
    # cos sim is bounded in [-1, 1]: exp cannot overflow, no max-shift needed.
    # TODO(synk): on v6e/v7x the exp stream could be done in bf16 (2x EUP throughput);
    # kept f32 here for v5e compatibility and reference parity.
    p_att = jnp.exp(s)
    p_att = p_att / jnp.sum(p_att, axis=-1, keepdims=True)
    wf = jnp.dot(p_att.astype(jnp.bfloat16), x1.astype(jnp.bfloat16),
                 preferred_element_type=jnp.float32)                      # (N,H)

    # ---- entropy-softmax weighted branch input ----
    wf2 = ent_ref[...] * x1                                               # (N,H)

    # ---- fused num_K-layer residual GNN stacks, all three branches at once ----
    # Branches stacked along ROWS: one (3N,H)@(H,H) weight matmul per layer (no kron
    # block-diagonal inflation), then three (N,N)@(N,H) propagations.
    a = a_ref[...]                                                        # (N,N) bf16
    num_k = cw_ref.shape[0]
    g0 = jnp.concatenate([x1, wf, wf2], axis=0)                           # (3N,H) f32

    def gnn_body(k, g):
        xw = jnp.dot(g.astype(jnp.bfloat16), cw_ref[k],
                     preferred_element_type=jnp.float32)                  # (3N,H)
        xwb = xw.astype(jnp.bfloat16)
        prop = jnp.concatenate(
            [jnp.dot(a, xwb[i * n:(i + 1) * n],
                     preferred_element_type=jnp.float32) for i in range(3)],
            axis=0)                                                       # (3N,H)
        return g + prop + cb_ref[k]                                       # residual f32

    g = lax.fori_loop(0, num_k, gnn_body, g0, unroll=True)

    # ---- single lane-packed output slab: [hyper | gnn | gnn2 | gnn3 | wf2] ----
    o_ref[...] = jnp.concatenate(
        [hyper_out, g[:n], g[n:2 * n], g[2 * n:], wf2], axis=-1)


# ------------------------------ Pallas wrapper ------------------------------ #

def _full_spec(shape):
    nd = len(shape)
    return pl.BlockSpec(shape, lambda i: (0,) * nd)


def pallas_hypergcn_fused(features, w1_bf16, b1, p_bf16, a_bf16, ent,
                          hyper_w, hyper_b, conv_w, conv_b):
    n, d = features.shape
    h = w1_bf16.shape[1]
    num_l = hyper_w.shape[0]
    num_k = conv_w.shape[0]

    args = (features, w1_bf16, b1.reshape(1, h), p_bf16, a_bf16, ent,
            hyper_w, hyper_b, conv_w, conv_b)
    out_shape = jax.ShapeDtypeStruct((n, 5 * h), jnp.float32)

    # advisory cost estimate so XLA can schedule/overlap the P_hyper rebuild
    flops = (2 * n * d * h
             + num_l * (2 * n * h * h + 2 * n * n * h)
             + 2 * n * n * h + 2 * n * n * h
             + num_k * (2 * 3 * n * h * h + 3 * 2 * n * n * h))
    bytes_accessed = (sum(int(np.prod(x.shape)) * jnp.dtype(x.dtype).itemsize
                          for x in args)
                      + int(np.prod(out_shape.shape)) * 4)
    cost = pl.CostEstimate(flops=int(flops), transcendentals=int(n * n + n),
                           bytes_accessed=int(bytes_accessed))

    # explicit scoped-VMEM limit (generation-safe: min 16 MiB, cap below v7x physical)
    vmem_limit = int(min(64 << 20, max(16 << 20, 4 * bytes_accessed)))

    return pl.pallas_call(
        _hypergcn_fused_kernel,
        out_shape=out_shape,
        grid=(1,),
        in_specs=[_full_spec(x.shape) for x in args],
        out_specs=_full_spec((n, 5 * h)),
        compiler_params=pltpu.CompilerParams(
            dimension_semantics=("arbitrary",),
            vmem_limit_bytes=vmem_limit),
        cost_estimate=cost,
    )(*args)


# --------------------------- graph construction glue ------------------------ #

def build_hyper_index(dia_len):
    """Reproduces create_hyper_index's hyperedge_index / hyperedge_type1."""
    num_modality = 3
    node_count, edge_count = 0, 0
    pairs, hyperedge_type1 = [], []
    for i in dia_len:
        nodes = [j + node_count for j in range(i * num_modality)]
        nodes_l, nodes_a, nodes_v = nodes[:i], nodes[i:2 * i], nodes[2 * i:]
        index1 = nodes_l + nodes_a + nodes_v
        for t in range(i):
            index1 += [nodes_l[t], nodes_a[t], nodes_v[t]]
        index2 = []
        for t in range(i + 3):
            index2 += [edge_count] * (i if t < 3 else 3)
            edge_count += 1
        pairs += list(zip(index1, index2))
        hyperedge_type1 += [1] * i + [0] * 3
        node_count += i * num_modality
    return pairs, node_count, edge_count, np.array(hyperedge_type1, np.float32)


def build_hyper_structure(pairs, n_nodes, n_edges):
    """Incidence matrix H and B^-1 (structure only; weight-dependent parts in jit)."""
    Hm = np.zeros((n_nodes, n_edges), np.float32)
    for n, e in pairs:
        Hm[n, e] = 1.0
    B = Hm.sum(axis=0)
    B_inv = np.where(B > 0, 1.0 / np.maximum(B, 1e-12), 0.0).astype(np.float32)
    return Hm, B_inv


def build_gnn_prop(dia_len):
    """Dense GCN-normalized adjacency from create_gnn_index edges."""
    num_modality = 3
    node_count, edges = 0, []
    for i in dia_len:
        nodes = [j + node_count for j in range(i * num_modality)]
        nodes_l, nodes_a, nodes_v = nodes[:i], nodes[i:2 * i], nodes[2 * i:]
        edges += (list(permutations(nodes_l, 2)) + list(permutations(nodes_a, 2))
                  + list(permutations(nodes_v, 2)))
        for t in range(i):
            edges += list(permutations([nodes_l[t], nodes_a[t], nodes_v[t]], 2))
        node_count += i * num_modality
    N = node_count
    A = np.zeros((N, N), np.float32)
    for s, d in edges:
        A[d, s] = 1.0
    # TODO(synk): highConv class is not provided in the reference source; using
    # standard GCN normalization (self-loops + symmetric D^-1/2 A D^-1/2).
    A = A + np.eye(N, dtype=np.float32)
    deg = A.sum(axis=1)
    dinv = 1.0 / np.sqrt(np.maximum(deg, 1e-12))
    return (dinv[:, None] * A * dinv[None, :]).astype(np.float32)


def build_features(a, v, l, dia_len):
    parts, off = [], 0
    for i in dia_len:
        parts += [l[off:off + i], a[off:off + i], v[off:off + i]]
        off += i
    return jnp.concatenate(parts, axis=0)


def build_reverse_index(dia_len):
    l_idx, a_idx, v_idx, off = [], [], [], 0
    for i in dia_len:
        l_idx += list(range(off, off + i))
        a_idx += list(range(off + i, off + 2 * i))
        v_idx += list(range(off + 2 * i, off + 3 * i))
        off += 3 * i
    return (np.array(l_idx, np.int32), np.array(a_idx, np.int32),
            np.array(v_idx, np.int32))


def get_batch_entropy(tokens):
    """num_modality == 3 variant: each utterance entropy repeated 3 times."""
    out = []
    for data in tokens:
        dia_tokens = [t for st in data for t in st]
        length = len(dia_tokens)
        counts = Counter(dia_tokens)
        for utt in data:
            shanno = 0.0
            for token in utt:
                prob = counts[token] / length
                shanno -= prob * math.log(prob, 2)
            out.extend([shanno] * 3)
    return np.array(out, np.float32)


# ------------------------------- full forward ------------------------------- #

def hypergcn_forward(params, a, v, l, dia_len, qmask, Sentence):
    num_L, num_K = params["num_L"], params["num_K"]
    H = params["fc1_w"].shape[1]

    # ---- eager / Python glue: speaker emb, graph structure, entropy, reorder ----
    qm = jnp.concatenate([qmask[:x, i, :] for i, x in enumerate(dia_len)], axis=0)
    spk_idx = jnp.argmax(qm, axis=-1)
    l = l + params["speaker_emb"][spk_idx]

    pairs, n_nodes, n_edges, het = build_hyper_index(dia_len)
    features = build_features(a, v, l, dia_len)                    # (N, n_dim)

    Hm, B_inv = build_hyper_structure(pairs, n_nodes, n_edges)     # numpy (structure)
    A_gnn = build_gnn_prop(dia_len)                                # numpy
    s2 = get_batch_entropy(Sentence)                               # numpy (N,)
    l_idx, a_idx, v_idx = build_reverse_index(dia_len)             # numpy

    # mirror of (unused) edge attrs in the reference forward
    # TODO(synk): custom HypergraphConv / highConv classes are not part of the provided
    # source; standard hypergraph-conv / GCN semantics are used, so edge_attr, EW_weight
    # and dia_len are not consumed inside the conv layers.
    het_col = jnp.asarray(het).reshape(-1, 1)
    _edge_attr = (params["hyperedge_attr1"] * het_col
                  + params["hyperedge_attr2"] * (1.0 - het_col))
    _EW = params["EW_weight"][:len(pairs)]

    # ---- stack layer params once (fused kernel loops over the layer axis) ----
    hyper_w = jnp.stack(params["hyper_w"]).astype(jnp.bfloat16)            # (L,H,H)
    hyper_b = jnp.stack(params["hyper_b"]).reshape(num_L, 1, H)            # (L,1,H)
    conv_w = jnp.stack(params["conv_w"]).astype(jnp.bfloat16)              # (K,H,H)
    conv_b = jnp.stack(params["conv_b"]).reshape(num_K, 1, H)              # (K,1,H)
    weight = params["hyperedge_weight"][:n_edges]

    def reverse(feats):
        return jnp.concatenate([feats[l_idx], feats[a_idx], feats[v_idx]], axis=-1)

    # ---- dense numeric portion: jitted (graph structure is shape-static here) ----
    @jax.jit
    def dense(features, fc1_w, fc1_b, weight, Hm_j, Binv_j, A_j, s2_j,
              hyper_w, hyper_b, conv_w, conv_b):
        # dense PyG-style HypergraphConv propagation: D^-1 H diag(w) B^-1 H^T
        D = Hm_j @ weight
        D_inv = jnp.where(D > 0, 1.0 / jnp.maximum(D, 1e-12), 0.0)
        P_hyper = ((D_inv[:, None] * Hm_j) * (weight * Binv_j)[None, :]) @ Hm_j.T

        ent = jax.nn.softmax(s2_j, axis=0).reshape(-1, 1)

        # single fused Pallas kernel: fc1 + hyper stack + three GNN branch stacks
        packed = pallas_hypergcn_fused(
            features, fc1_w.astype(jnp.bfloat16), fc1_b,
            P_hyper.astype(jnp.bfloat16), A_j.astype(jnp.bfloat16), ent,
            hyper_w, hyper_b, conv_w, conv_b)                       # (N, 5H)

        out = packed[:, :H]               # hypergraph stack output
        gnn_out = packed[:, H:2 * H]      # GNN branch started from x1
        gnn_out2 = packed[:, 2 * H:3 * H]  # GNN branch started from cos-attn(x1)
        gnn_out3 = packed[:, 3 * H:4 * H]  # GNN branch started from entropy * x1
        wf2 = packed[:, 4 * H:]           # entropy-weighted features

        out2 = jnp.concatenate([features, out, gnn_out], axis=-1)   # use_residue=True
        out3 = jnp.concatenate([features, out, gnn_out2], axis=-1)
        out4 = jnp.concatenate([features, wf2, gnn_out3], axis=-1)
        return reverse(out2), reverse(out2), reverse(out3), reverse(out4)

    return dense(features, params["fc1_w"], params["fc1_b"], weight,
                 jnp.asarray(Hm), jnp.asarray(B_inv), jnp.asarray(A_gnn),
                 jnp.asarray(s2), hyper_w, hyper_b, conv_w, conv_b)


# ----------------------------------- main ----------------------------------- #

def init_params(key, n_dim, nhidden, n_speakers, num_L, num_K):
    ks = jax.random.split(key, 8 + 2 * (num_L + num_K))
    ki = iter(ks)
    lim = 1.0 / math.sqrt(n_dim)
    params = {
        "num_L": num_L, "num_K": num_K,
        "speaker_emb": jax.random.normal(next(ki), (n_speakers, n_dim), jnp.float32),
        "fc1_w": jax.random.uniform(next(ki), (n_dim, nhidden), jnp.float32, -lim, lim),
        "fc1_b": jax.random.uniform(next(ki), (nhidden,), jnp.float32, -lim, lim),
        "hyperedge_weight": jnp.ones((1000,), jnp.float32),
        "EW_weight": jnp.ones((5200,), jnp.float32),
        "hyperedge_attr1": jax.random.uniform(next(ki), (nhidden,), jnp.float32),
        "hyperedge_attr2": jax.random.uniform(next(ki), (nhidden,), jnp.float32),
        "hyper_w": [], "hyper_b": [], "conv_w": [], "conv_b": [],
    }
    limh = 1.0 / math.sqrt(nhidden)
    for _ in range(num_L):
        params["hyper_w"].append(
            jax.random.uniform(next(ki), (nhidden, nhidden), jnp.float32, -limh, limh))
        params["hyper_b"].append(
            jax.random.uniform(next(ki), (nhidden,), jnp.float32, -limh, limh))
    for _ in range(num_K):
        params["conv_w"].append(
            jax.random.uniform(next(ki), (nhidden, nhidden), jnp.float32, -limh, limh))
        params["conv_b"].append(
            jax.random.uniform(next(ki), (nhidden,), jnp.float32, -limh, limh))
    return params


if __name__ == "__main__":
    key = jax.random.PRNGKey(0)
    n_dim, nhidden = 32, 32
    n_speakers, num_L, num_K = 2, 3, 4
    dia_len = [5, 3]                      # total_utts = 8, num_nodes = 24
    total_utts = sum(dia_len)

    k1, k2, k3, k4, k5 = jax.random.split(key, 5)
    a = jax.random.normal(k1, (total_utts, n_dim), jnp.float32)
    v = jax.random.normal(k2, (total_utts, n_dim), jnp.float32)
    l = jax.random.normal(k3, (total_utts, n_dim), jnp.float32)
    qmask = jax.random.uniform(k4, (max(dia_len), len(dia_len), n_speakers), jnp.float32)
    Sentence = [
        [[1, 2, 3], [2, 3], [1, 4, 4], [5], [1, 2]],
        [[7, 8], [8, 9, 7], [7]],
    ]

    params = init_params(k5, n_dim, nhidden, n_speakers, num_L, num_K)

    outs = hypergcn_forward(params, a, v, l, dia_len, qmask, Sentence)
    outs = jax.block_until_ready(outs)

    expected = (total_utts, 3 * (n_dim + 2 * nhidden))
    assert all(o.shape == expected for o in outs), [o.shape for o in outs]
    assert all(bool(jnp.all(jnp.isfinite(o))) for o in outs)
    print("KERNEL_OK")
</pallas_src>

<mosaic_0001>
module attributes {stable_mosaic.version = 11 : i64} {
  func.func @_hypergcn_fused_kernel(%arg0: i32, %arg1: memref<24x32xf32, #tpu.memory_space<vmem>>, %arg2: memref<32x32xbf16, #tpu.memory_space<vmem>>, %arg3: memref<1x32xf32, #tpu.memory_space<vmem>>, %arg4: memref<24x24xbf16, #tpu.memory_space<vmem>>, %arg5: memref<24x24xbf16, #tpu.memory_space<vmem>>, %arg6: memref<24x1xf32, #tpu.memory_space<vmem>>, %arg7: memref<3x32x32xbf16, #tpu.memory_space<vmem>>, %arg8: memref<3x1x32xf32, #tpu.memory_space<vmem>>, %arg9: memref<4x32x32xbf16, #tpu.memory_space<vmem>>, %arg10: memref<4x1x32xf32, #tpu.memory_space<vmem>>, %arg11: memref<24x160xf32, #tpu.memory_space<vmem>>) attributes {dimension_semantics = [#tpu.dimension_semantics<arbitrary>], iteration_bounds = array<i64: 1>, scalar_prefetch = 0 : i64, scratch_operands = 0 : i64, tpu.core_type = #tpu.core_type<tc>, window_params = [{pipeline_mode = #tpu.pipeline_mode<synchronous>, transform_indices = @transform_0, window_bounds = array<i64: 24, 32>}, {pipeline_mode = #tpu.pipeline_mode<synchronous>, transform_indices = @transform_1, window_bounds = array<i64: 32, 32>}, {pipeline_mode = #tpu.pipeline_mode<synchronous>, transform_indices = @transform_2, window_bounds = array<i64: 1, 32>}, {pipeline_mode = #tpu.pipeline_mode<synchronous>, transform_indices = @transform_3, window_bounds = array<i64: 24, 24>}, {pipeline_mode = #tpu.pipeline_mode<synchronous>, transform_indices = @transform_4, window_bounds = array<i64: 24, 24>}, {pipeline_mode = #tpu.pipeline_mode<synchronous>, transform_indices = @transform_5, window_bounds = array<i64: 24, 1>}, {pipeline_mode = #tpu.pipeline_mode<synchronous>, transform_indices = @transform_6, window_bounds = array<i64: 3, 32, 32>}, {pipeline_mode = #tpu.pipeline_mode<synchronous>, transform_indices = @transform_7, window_bounds = array<i64: 3, 1, 32>}, {pipeline_mode = #tpu.pipeline_mode<synchronous>, transform_indices = @transform_8, window_bounds = array<i64: 4, 32, 32>}, {pipeline_mode = #tpu.pipeline_mode<synchronous>, transform_indices = @transform_9, window_bounds = array<i64: 4, 1, 32>}, {pipeline_mode = #tpu.pipeline_mode<synchronous>, transform_indices = @transform_10, window_bounds = array<i64: 24, 160>}]} {
    %c0 = arith.constant 0 : index
    %c0_0 = arith.constant 0 : index
    %0 = vector.load %arg1[%c0, %c0_0] : memref<24x32xf32, #tpu.memory_space<vmem>>, vector<24x32xf32>
    %1 = arith.truncf %0 : vector<24x32xf32> to vector<24x32xbf16>
    %c0_1 = arith.constant 0 : index
    %c0_2 = arith.constant 0 : index
    %2 = vector.load %arg2[%c0_1, %c0_2] : memref<32x32xbf16, #tpu.memory_space<vmem>>, vector<32x32xbf16>
    %cst = arith.constant dense<0.000000e+00> : vector<24x32xf32>
    %3 = tpu.matmul %1, %2, %cst {dimension_numbers = #tpu.dot_dimension_numbers<[1], [0], [0], [1], [0, 0, 1, 1], [], []>} : vector<24x32xbf16>, vector<32x32xbf16>, vector<24x32xf32> -> vector<24x32xf32>
    %c0_3 = arith.constant 0 : index
    %c0_4 = arith.constant 0 : index
    %4 = vector.load %arg3[%c0_3, %c0_4] : memref<1x32xf32, #tpu.memory_space<vmem>>, vector<1x32xf32>
    %5 = vector.broadcast %4 : vector<1x32xf32> to vector<24x32xf32>
    %6 = arith.addf %3, %5 : vector<24x32xf32>
    %c0_5 = arith.constant 0 : index
    %c0_6 = arith.constant 0 : index
    %7 = vector.load %arg4[%c0_5, %c0_6] : memref<24x24xbf16, #tpu.memory_space<vmem>>, vector<24x24xbf16>
    %c0_i32 = arith.constant 0 : i32
    %8 = arith.truncf %6 : vector<24x32xf32> to vector<24x32xbf16>
    %9 = arith.index_cast %c0_i32 : i32 to index
    %c0_7 = arith.constant 0 : index
    %c0_8 = arith.constant 0 : index
    %10 = vector.load %arg7[%9, %c0_7, %c0_8] : memref<3x32x32xbf16, #tpu.memory_space<vmem>>, vector<1x32x32xbf16>
    %11 = vector.shape_cast %10 : vector<1x32x32xbf16> to vector<32x32xbf16>
    %cst_9 = arith.constant dense<0.000000e+00> : vector<24x32xf32>
    %12 = tpu.matmul %8, %11, %cst_9 {dimension_numbers = #tpu.dot_dimension_numbers<[1], [0], [0], [1], [0, 0, 1, 1], [], []>} : vector<24x32xbf16>, vector<32x32xbf16>, vector<24x32xf32> -> vector<24x32xf32>
    %13 = arith.truncf %12 : vector<24x32xf32> to vector<24x32xbf16>
    %cst_10 = arith.constant dense<0.000000e+00> : vector<24x32xf32>
    %14 = tpu.matmul %7, %13, %cst_10 {dimension_numbers = #tpu.dot_dimension_numbers<[1], [0], [0], [1], [0, 0, 1, 1], [], []>} : vector<24x24xbf16>, vector<24x32xbf16>, vector<24x32xf32> -> vector<24x32xf32>
    %15 = arith.index_cast %c0_i32 : i32 to index
    %c0_11 = arith.constant 0 : index
    %c0_12 = arith.constant 0 : index
    %16 = vector.load %arg8[%15, %c0_11, %c0_12] : memref<3x1x32xf32, #tpu.memory_space<vmem>>, vector<1x1x32xf32>
    %17 = vector.shape_cast %16 : vector<1x1x32xf32> to vector<1x32xf32>
    %18 = vector.broadcast %17 : vector<1x32xf32> to vector<24x32xf32>
    %19 = arith.addf %14, %18 : vector<24x32xf32>
    %c1_i32 = arith.constant 1 : i32
    %20 = arith.truncf %19 : vector<24x32xf32> to vector<24x32xbf16>
    %21 = arith.index_cast %c1_i32 : i32 to index
    %c0_13 = arith.constant 0 : index
    %c0_14 = arith.constant 0 : index
    %22 = vector.load %arg7[%21, %c0_13, %c0_14] : memref<3x32x32xbf16, #tpu.memory_space<vmem>>, vector<1x32x32xbf16>
    %23 = vector.shape_cast %22 : vector<1x32x32xbf16> to vector<32x32xbf16>
    %cst_15 = arith.constant dense<0.000000e+00> : vector<24x32xf32>
    %24 = tpu.matmul %20, %23, %cst_15 {dimension_numbers = #tpu.dot_dimension_numbers<[1], [0], [0], [1], [0, 0, 1, 1], [], []>} : vector<24x32xbf16>, vector<32x32xbf16>, vector<24x32xf32> -> vector<24x32xf32>
    %25 = arith.truncf %24 : vector<24x32xf32> to vector<24x32xbf16>
    %cst_16 = arith.constant dense<0.000000e+00> : vector<24x32xf32>
    %26 = tpu.matmul %7, %25, %cst_16 {dimension_numbers = #tpu.dot_dimension_numbers<[1], [0], [0], [1], [0, 0, 1, 1], [], []>} : vector<24x24xbf16>, vector<24x32xbf16>, vector<24x32xf32> -> vector<24x32xf32>
    %27 = arith.index_cast %c1_i32 : i32 to index
    %c0_17 = arith.constant 0 : index
    %c0_18 = arith.constant 0 : index
    %28 = vector.load %arg8[%27, %c0_17, %c0_18] : memref<3x1x32xf32, #tpu.memory_space<vmem>>, vector<1x1x32xf32>
    %29 = vector.shape_cast %28 : vector<1x1x32xf32> to vector<1x32xf32>
    %30 = vector.broadcast %29 : vector<1x32xf32> to vector<24x32xf32>
    %31 = arith.addf %26, %30 : vector<24x32xf32>
    %c2_i32 = arith.constant 2 : i32
    %32 = arith.truncf %31 : vector<24x32xf32> to vector<24x32xbf16>
    %33 = arith.index_cast %c2_i32 : i32 to index
    %c0_19 = arith.constant 0 : index
    %c0_20 = arith.constant 0 : index
    %34 = vector.load %arg7[%33, %c0_19, %c0_20] : memref<3x32x32xbf16, #tpu.memory_space<vmem>>, vector<1x32x32xbf16>
    %35 = vector.shape_cast %34 : vector<1x32x32xbf16> to vector<32x32xbf16>
    %cst_21 = arith.constant dense<0.000000e+00> : vector<24x32xf32>
    %36 = tpu.matmul %32, %35, %cst_21 {dimension_numbers = #tpu.dot_dimension_numbers<[1], [0], [0], [1], [0, 0, 1, 1], [], []>} : vector<24x32xbf16>, vector<32x32xbf16>, vector<24x32xf32> -> vector<24x32xf32>
    %37 = arith.truncf %36 : vector<24x32xf32> to vector<24x32xbf16>
    %cst_22 = arith.constant dense<0.000000e+00> : vector<24x32xf32>
    %38 = tpu.matmul %7, %37, %cst_22 {dimension_numbers = #tpu.dot_dimension_numbers<[1], [0], [0], [1], [0, 0, 1, 1], [], []>} : vector<24x24xbf16>, vector<24x32xbf16>, vector<24x32xf32> -> vector<24x32xf32>
    %39 = arith.index_cast %c2_i32 : i32 to index
    %c0_23 = arith.constant 0 : index
    %c0_24 = arith.constant 0 : index
    %40 = vector.load %arg8[%39, %c0_23, %c0_24] : memref<3x1x32xf32, #tpu.memory_space<vmem>>, vector<1x1x32xf32>
    %41 = vector.shape_cast %40 : vector<1x1x32xf32> to vector<1x32xf32>
    %42 = vector.broadcast %41 : vector<1x32xf32> to vector<24x32xf32>
    %43 = arith.addf %38, %42 : vector<24x32xf32>
    %c3_i32 = arith.constant 3 : i32
    %44 = arith.mulf %6, %6 : vector<24x32xf32>
    %cst_25 = arith.constant dense<0.000000e+00> : vector<24xf32>
    %45 = vector.multi_reduction <add>, %44, %cst_25 [1] : vector<24x32xf32> to vector<24xf32>
    %46 = vector.shape_cast %45 : vector<24xf32> to vector<24x1xf32>
    %cst_26 = arith.constant 9.99999996E-13 : f32
    %47 = vector.broadcast %cst_26 : f32 to vector<24x1xf32>
    %48 = arith.addf %46, %47 : vector<24x1xf32>
    %49 = math.rsqrt %48 : vector<24x1xf32>
    %50 = vector.broadcast %49 : vector<24x1xf32> to vector<24x32xf32>
    %51 = arith.mulf %6, %50 : vector<24x32xf32>
    %52 = arith.truncf %51 : vector<24x32xf32> to vector<24x32xbf16>
    %cst_27 = arith.constant dense<0.000000e+00> : vector<24x24xf32>
    %53 = tpu.matmul %52, %52, %cst_27 {dimension_numbers = #tpu.dot_dimension_numbers<[1], [1], [0], [0], [0, 0, 1, 0], [], []>} : vector<24x32xbf16>, vector<24x32xbf16>, vector<24x24xf32> -> vector<24x24xf32>
    %54 = math.exp %53 : vector<24x24xf32>
    %cst_28 = arith.constant dense<0.000000e+00> : vector<24xf32>
    %55 = vector.multi_reduction <add>, %54, %cst_28 [1] : vector<24x24xf32> to vector<24xf32>
    %56 = vector.shape_cast %55 : vector<24xf32> to vector<24x1xf32>
    %57 = vector.broadcast %56 : vector<24x1xf32> to vector<24x24xf32>
    %58 = arith.divf %54, %57 : vector<24x24xf32>
    %59 = arith.truncf %58 : vector<24x24xf32> to vector<24x24xbf16>
    %60 = arith.truncf %6 : vector<24x32xf32> to vector<24x32xbf16>
    %cst_29 = arith.constant dense<0.000000e+00> : vector<24x32xf32>
    %61 = tpu.matmul %59, %60, %cst_29 {dimension_numbers = #tpu.dot_dimension_numbers<[1], [0], [0], [1], [0, 0, 1, 1], [], []>} : vector<24x24xbf16>, vector<24x32xbf16>, vector<24x32xf32> -> vector<24x32xf32>
    %c0_30 = arith.constant 0 : index
    %c0_31 = arith.constant 0 : index
    %62 = vector.load %arg6[%c0_30, %c0_31] : memref<24x1xf32, #tpu.memory_space<vmem>>, vector<24x1xf32>
    %63 = vector.broadcast %62 : vector<24x1xf32> to vector<24x32xf32>
    %64 = arith.mulf %63, %6 : vector<24x32xf32>
    %c0_32 = arith.constant 0 : index
    %c0_33 = arith.constant 0 : index
    %65 = vector.load %arg5[%c0_32, %c0_33] : memref<24x24xbf16, #tpu.memory_space<vmem>>, vector<24x24xbf16>
    %66 = tpu.concatenate %6, %61, %64 in 0 : vector<24x32xf32>, vector<24x32xf32>, vector<24x32xf32> -> vector<72x32xf32>
    %c0_i32_34 = arith.constant 0 : i32
    %67 = arith.truncf %66 : vector<72x32xf32> to vector<72x32xbf16>
    %68 = arith.index_cast %c0_i32_34 : i32 to index
    %c0_35 = arith.constant 0 : index
    %c0_36 = arith.constant 0 : index
    %69 = vector.load %arg9[%68, %c0_35, %c0_36] : memref<4x32x32xbf16, #tpu.memory_space<vmem>>, vector<1x32x32xbf16>
    %70 = vector.shape_cast %69 : vector<1x32x32xbf16> to vector<32x32xbf16>
    %cst_37 = arith.constant dense<0.000000e+00> : vector<72x32xf32>
    %71 = tpu.matmul %67, %70, %cst_37 {dimension_numbers = #tpu.dot_dimension_numbers<[1], [0], [0], [1], [0, 0, 1, 1], [], []>} : vector<72x32xbf16>, vector<32x32xbf16>, vector<72x32xf32> -> vector<72x32xf32>
    %72 = arith.truncf %71 : vector<72x32xf32> to vector<72x32xbf16>
    %73 = vector.extract_strided_slice %72 {offsets = [0, 0], sizes = [24, 32], strides = [1, 1]} : vector<72x32xbf16> to vector<24x32xbf16>
    %cst_38 = arith.constant dense<0.000000e+00> : vector<24x32xf32>
    %74 = tpu.matmul %65, %73, %cst_38 {dimension_numbers = #tpu.dot_dimension_numbers<[1], [0], [0], [1], [0, 0, 1, 1], [], []>} : vector<24x24xbf16>, vector<24x32xbf16>, vector<24x32xf32> -> vector<24x32xf32>
    %75 = vector.extract_strided_slice %72 {offsets = [24, 0], sizes = [24, 32], strides = [1, 1]} : vector<72x32xbf16> to vector<24x32xbf16>
    %cst_39 = arith.constant dense<0.000000e+00> : vector<24x32xf32>
    %76 = tpu.matmul %65, %75, %cst_39 {dimension_numbers = #tpu.dot_dimension_numbers<[1], [0], [0], [1], [0, 0, 1, 1], [], []>} : vector<24x24xbf16>, vector<24x32xbf16>, vector<24x32xf32> -> vector<24x32xf32>
    %77 = vector.extract_strided_slice %72 {offsets = [48, 0], sizes = [24, 32], strides = [1, 1]} : vector<72x32xbf16> to vector<24x32xbf16>
    %cst_40 = arith.constant dense<0.000000e+00> : vector<24x32xf32>
    %78 = tpu.matmul %65, %77, %cst_40 {dimension_numbers = #tpu.dot_dimension_numbers<[1], [0], [0], [1], [0, 0, 1, 1], [], []>} : vector<24x24xbf16>, vector<24x32xbf16>, vector<24x32xf32> -> vector<24x32xf32>
    %79 = tpu.concatenate %74, %76, %78 in 0 : vector<24x32xf32>, vector<24x32xf32>, vector<24x32xf32> -> vector<72x32xf32>
    %80 = arith.addf %66, %79 : vector<72x32xf32>
    %81 = arith.index_cast %c0_i32_34 : i32 to index
    %c0_41 = arith.constant 0 : index
    %c0_42 = arith.constant 0 : index
    %82 = vector.load %arg10[%81, %c0_41, %c0_42] : memref<4x1x32xf32, #tpu.memory_space<vmem>>, vector<1x1x32xf32>
    %83 = vector.shape_cast %82 : vector<1x1x32xf32> to vector<1x32xf32>
    %84 = vector.broadcast %83 : vector<1x32xf32> to vector<72x32xf32>
    %85 = arith.addf %80, %84 : vector<72x32xf32>
    %c1_i32_43 = arith.constant 1 : i32
    %86 = arith.truncf %85 : vector<72x32xf32> to vector<72x32xbf16>
    %87 = arith.index_cast %c1_i32_43 : i32 to index
    %c0_44 = arith.constant 0 : index
    %c0_45 = arith.constant 0 : index
    %88 = vector.load %arg9[%87, %c0_44, %c0_45] : memref<4x32x32xbf16, #tpu.memory_space<vmem>>, vector<1x32x32xbf16>
    %89 = vector.shape_cast %88 : vector<1x32x32xbf16> to vector<32x32xbf16>
    %cst_46 = arith.constant dense<0.000000e+00> : vector<72x32xf32>
    %90 = tpu.matmul %86, %89, %cst_46 {dimension_numbers = #tpu.dot_dimension_numbers<[1], [0], [0], [1], [0, 0, 1, 1], [], []>} : vector<72x32xbf16>, vector<32x32xbf16>, vector<72x32xf32> -> vector<72x32xf32>
    %91 = arith.truncf %90 : vector<72x32xf32> to vector<72x32xbf16>
    %92 = vector.extract_strided_slice %91 {offsets = [0, 0], sizes = [24, 32], strides = [1, 1]} : vector<72x32xbf16> to vector<24x32xbf16>
    %cst_47 = arith.constant dense<0.000000e+00> : vector<24x32xf32>
    %93 = tpu.matmul %65, %92, %cst_47 {dimension_numbers = #tpu.dot_dimension_numbers<[1], [0], [0], [1], [0, 0, 1, 1], [], []>} : vector<24x24xbf16>, vector<24x32xbf16>, vector<24x32xf32> -> vector<24x32xf32>
    %94 = vector.extract_strided_slice %91 {offsets = [24, 0], sizes = [24, 32], strides = [1, 1]} : vector<72x32xbf16> to vector<24x32xbf16>
    %cst_48 = arith.constant dense<0.000000e+00> : vector<24x32xf32>
    %95 = tpu.matmul %65, %94, %cst_48 {dimension_numbers = #tpu.dot_dimension_numbers<[1], [0], [0], [1], [0, 0, 1, 1], [], []>} : vector<24x24xbf16>, vector<24x32xbf16>, vector<24x32xf32> -> vector<24x32xf32>
    %96 = vector.extract_strided_slice %91 {offsets = [48, 0], sizes = [24, 32], strides = [1, 1]} : vector<72x32xbf16> to vector<24x32xbf16>
    %cst_49 = arith.constant dense<0.000000e+00> : vector<24x32xf32>
    %97 = tpu.matmul %65, %96, %cst_49 {dimension_numbers = #tpu.dot_dimension_numbers<[1], [0], [0], [1], [0, 0, 1, 1], [], []>} : vector<24x24xbf16>, vector<24x32xbf16>, vector<24x32xf32> -> vector<24x32xf32>
    %98 = tpu.concatenate %93, %95, %97 in 0 : vector<24x32xf32>, vector<24x32xf32>, vector<24x32xf32> -> vector<72x32xf32>
    %99 = arith.addf %85, %98 : vector<72x32xf32>
    %100 = arith.index_cast %c1_i32_43 : i32 to index
    %c0_50 = arith.constant 0 : index
    %c0_51 = arith.constant 0 : index
    %101 = vector.load %arg10[%100, %c0_50, %c0_51] : memref<4x1x32xf32, #tpu.memory_space<vmem>>, vector<1x1x32xf32>
    %102 = vector.shape_cast %101 : vector<1x1x32xf32> to vector<1x32xf32>
    %103 = vector.broadcast %102 : vector<1x32xf32> to vector<72x32xf32>
    %104 = arith.addf %99, %103 : vector<72x32xf32>
    %c2_i32_52 = arith.constant 2 : i32
    %105 = arith.truncf %104 : vector<72x32xf32> to vector<72x32xbf16>
    %106 = arith.index_cast %c2_i32_52 : i32 to index
    %c0_53 = arith.constant 0 : index
    %c0_54 = arith.constant 0 : index
    %107 = vector.load %arg9[%106, %c0_53, %c0_54] : memref<4x32x32xbf16, #tpu.memory_space<vmem>>, vector<1x32x32xbf16>
    %108 = vector.shape_cast %107 : vector<1x32x32xbf16> to vector<32x32xbf16>
    %cst_55 = arith.constant dense<0.000000e+00> : vector<72x32xf32>
    %109 = tpu.matmul %105, %108, %cst_55 {dimension_numbers = #tpu.dot_dimension_numbers<[1], [0], [0], [1], [0, 0, 1, 1], [], []>} : vector<72x32xbf16>, vector<32x32xbf16>, vector<72x32xf32> -> vector<72x32xf32>
    %110 = arith.truncf %109 : vector<72x32xf32> to vector<72x32xbf16>
    %111 = vector.extract_strided_slice %110 {offsets = [0, 0], sizes = [24, 32], strides = [1, 1]} : vector<72x32xbf16> to vector<24x32xbf16>
    %cst_56 = arith.constant dense<0.000000e+00> : vector<24x32xf32>
    %112 = tpu.matmul %65, %111, %cst_56 {dimension_numbers = #tpu.dot_dimension_numbers<[1], [0], [0], [1], [0, 0, 1, 1], [], []>} : vector<24x24xbf16>, vector<24x32xbf16>, vector<24x32xf32> -> vector<24x32xf32>
    %113 = vector.extract_strided_slice %110 {offsets = [24, 0], sizes = [24, 32], strides = [1, 1]} : vector<72x32xbf16> to vector<24x32xbf16>
    %cst_57 = arith.constant dense<0.000000e+00> : vector<24x32xf32>
    %114 = tpu.matmul %65, %113, %cst_57 {dimension_numbers = #tpu.dot_dimension_numbers<[1], [0], [0], [1], [0, 0, 1, 1], [], []>} : vector<24x24xbf16>, vector<24x32xbf16>, vector<24x32xf32> -> vector<24x32xf32>
    %115 = vector.extract_strided_slice %110 {offsets = [48, 0], sizes = [24, 32], strides = [1, 1]} : vector<72x32xbf16> to vector<24x32xbf16>
    %cst_58 = arith.constant dense<0.000000e+00> : vector<24x32xf32>
    %116 = tpu.matmul %65, %115, %cst_58 {dimension_numbers = #tpu.dot_dimension_numbers<[1], [0], [0], [1], [0, 0, 1, 1], [], []>} : vector<24x24xbf16>, vector<24x32xbf16>, vector<24x32xf32> -> vector<24x32xf32>
    %117 = tpu.concatenate %112, %114, %116 in 0 : vector<24x32xf32>, vector<24x32xf32>, vector<24x32xf32> -> vector<72x32xf32>
    %118 = arith.addf %104, %117 : vector<72x32xf32>
    %119 = arith.index_cast %c2_i32_52 : i32 to index
    %c0_59 = arith.constant 0 : index
    %c0_60 = arith.constant 0 : index
    %120 = vector.load %arg10[%119, %c0_59, %c0_60] : memref<4x1x32xf32, #tpu.memory_space<vmem>>, vector<1x1x32xf32>
    %121 = vector.shape_cast %120 : vector<1x1x32xf32> to vector<1x32xf32>
    %122 = vector.broadcast %121 : vector<1x32xf32> to vector<72x32xf32>
    %123 = arith.addf %118, %122 : vector<72x32xf32>
    %c3_i32_61 = arith.constant 3 : i32
    %124 = arith.truncf %123 : vector<72x32xf32> to vector<72x32xbf16>
    %125 = arith.index_cast %c3_i32_61 : i32 to index
    %c0_62 = arith.constant 0 : index
    %c0_63 = arith.constant 0 : index
    %126 = vector.load %arg9[%125, %c0_62, %c0_63] : memref<4x32x32xbf16, #tpu.memory_space<vmem>>, vector<1x32x32xbf16>
    %127 = vector.shape_cast %126 : vector<1x32x32xbf16> to vector<32x32xbf16>
    %cst_64 = arith.constant dense<0.000000e+00> : vector<72x32xf32>
    %128 = tpu.matmul %124, %127, %cst_64 {dimension_numbers = #tpu.dot_dimension_numbers<[1], [0], [0], [1], [0, 0, 1, 1], [], []>} : vector<72x32xbf16>, vector<32x32xbf16>, vector<72x32xf32> -> vector<72x32xf32>
    %129 = arith.truncf %128 : vector<72x32xf32> to vector<72x32xbf16>
    %130 = vector.extract_strided_slice %129 {offsets = [0, 0], sizes = [24, 32], strides = [1, 1]} : vector<72x32xbf16> to vector<24x32xbf16>
    %cst_65 = arith.constant dense<0.000000e+00> : vector<24x32xf32>
    %131 = tpu.matmul %65, %130, %cst_65 {dimension_numbers = #tpu.dot_dimension_numbers<[1], [0], [0], [1], [0, 0, 1, 1], [], []>} : vector<24x24xbf16>, vector<24x32xbf16>, vector<24x32xf32> -> vector<24x32xf32>
    %132 = vector.extract_strided_slice %129 {offsets = [24, 0], sizes = [24, 32], strides = [1, 1]} : vector<72x32xbf16> to vector<24x32xbf16>
    %cst_66 = arith.constant dense<0.000000e+00> : vector<24x32xf32>
    %133 = tpu.matmul %65, %132, %cst_66 {dimension_numbers = #tpu.dot_dimension_numbers<[1], [0], [0], [1], [0, 0, 1, 1], [], []>} : vector<24x24xbf16>, vector<24x32xbf16>, vector<24x32xf32> -> vector<24x32xf32>
    %134 = vector.extract_strided_slice %129 {offsets = [48, 0], sizes = [24, 32], strides = [1, 1]} : vector<72x32xbf16> to vector<24x32xbf16>
    %cst_67 = arith.constant dense<0.000000e+00> : vector<24x32xf32>
    %135 = tpu.matmul %65, %134, %cst_67 {dimension_numbers = #tpu.dot_dimension_numbers<[1], [0], [0], [1], [0, 0, 1, 1], [], []>} : vector<24x24xbf16>, vector<24x32xbf16>, vector<24x32xf32> -> vector<24x32xf32>
    %136 = tpu.concatenate %131, %133, %135 in 0 : vector<24x32xf32>, vector<24x32xf32>, vector<24x32xf32> -> vector<72x32xf32>
    %137 = arith.addf %123, %136 : vector<72x32xf32>
    %138 = arith.index_cast %c3_i32_61 : i32 to index
    %c0_68 = arith.constant 0 : index
    %c0_69 = arith.constant 0 : index
    %139 = vector.load %arg10[%138, %c0_68, %c0_69] : memref<4x1x32xf32, #tpu.memory_space<vmem>>, vector<1x1x32xf32>
    %140 = vector.shape_cast %139 : vector<1x1x32xf32> to vector<1x32xf32>
    %141 = vector.broadcast %140 : vector<1x32xf32> to vector<72x32xf32>
    %142 = arith.addf %137, %141 : vector<72x32xf32>
    %c4_i32 = arith.constant 4 : i32
    %143 = vector.extract_strided_slice %142 {offsets = [0, 0], sizes = [24, 32], strides = [1, 1]} : vector<72x32xf32> to vector<24x32xf32>
    %144 = vector.extract_strided_slice %142 {offsets = [24, 0], sizes = [24, 32], strides = [1, 1]} : vector<72x32xf32> to vector<24x32xf32>
    %145 = vector.extract_strided_slice %142 {offsets = [48, 0], sizes = [24, 32], strides = [1, 1]} : vector<72x32xf32> to vector<24x32xf32>
    %146 = tpu.concatenate %43, %143, %144, %145, %64 in 1 : vector<24x32xf32>, vector<24x32xf32>, vector<24x32xf32>, vector<24x32xf32>, vector<24x32xf32> -> vector<24x160xf32>
    %c0_70 = arith.constant 0 : index
    %c0_71 = arith.constant 0 : index
    %147 = vector.load %arg11[%c0_70, %c0_71] : memref<24x160xf32, #tpu.memory_space<vmem>>, vector<24x160xf32>
    tpu.vector_store %arg11[%c0_70, %c0_71], %146 {strides = array<i32>} : memref<24x160xf32, #tpu.memory_space<vmem>>, vector<24x160xf32>,
    return
  }
  func.func @transform_0(%arg0: i32) -> (i32, i32) {
    %c0_i32 = arith.constant 0 : i32
    %c0_i32_0 = arith.constant 0 : i32
    %c0_i32_1 = arith.constant 0 : i32
    return %c0_i32, %c0_i32_0 : i32, i32
  }
  func.func @transform_1(%arg0: i32) -> (i32, i32) {
    %c0_i32 = arith.constant 0 : i32
    %c0_i32_0 = arith.constant 0 : i32
    %c0_i32_1 = arith.constant 0 : i32
    return %c0_i32, %c0_i32_0 : i32, i32
  }
  func.func @transform_2(%arg0: i32) -> (i32, i32) {
    %c0_i32 = arith.constant 0 : i32
    %c0_i32_0 = arith.constant 0 : i32
    %c0_i32_1 = arith.constant 0 : i32
    return %c0_i32, %c0_i32_0 : i32, i32
  }
  func.func @transform_3(%arg0: i32) -> (i32, i32) {
    %c0_i32 = arith.constant 0 : i32
    %c0_i32_0 = arith.constant 0 : i32
    %c0_i32_1 = arith.constant 0 : i32
    return %c0_i32, %c0_i32_0 : i32, i32
  }
  func.func @transform_4(%arg0: i32) -> (i32, i32) {
    %c0_i32 = arith.constant 0 : i32
    %c0_i32_0 = arith.constant 0 : i32
    %c0_i32_1 = arith.constant 0 : i32
    return %c0_i32, %c0_i32_0 : i32, i32
  }
  func.func @transform_5(%arg0: i32) -> (i32, i32) {
    %c0_i32 = arith.constant 0 : i32
    %c0_i32_0 = arith.constant 0 : i32
    %c0_i32_1 = arith.constant 0 : i32
    return %c0_i32, %c0_i32_0 : i32, i32
  }
  func.func @transform_6(%arg0: i32) -> (i32, i32, i32) {
    %c0_i32 = arith.constant 0 : i32
    %c0_i32_0 = arith.constant 0 : i32
    %c0_i32_1 = arith.constant 0 : i32
    %c0_i32_2 = arith.constant 0 : i32
    return %c0_i32, %c0_i32_0, %c0_i32_1 : i32, i32, i32
  }
  func.func @transform_7(%arg0: i32) -> (i32, i32, i32) {
    %c0_i32 = arith.constant 0 : i32
    %c0_i32_0 = arith.constant 0 : i32
    %c0_i32_1 = arith.constant 0 : i32
    %c0_i32_2 = arith.constant 0 : i32
    return %c0_i32, %c0_i32_0, %c0_i32_1 : i32, i32, i32
  }
  func.func @transform_8(%arg0: i32) -> (i32, i32, i32) {
    %c0_i32 = arith.constant 0 : i32
    %c0_i32_0 = arith.constant 0 : i32
    %c0_i32_1 = arith.constant 0 : i32
    %c0_i32_2 = arith.constant 0 : i32
    return %c0_i32, %c0_i32_0, %c0_i32_1 : i32, i32, i32
  }
  func.func @transform_9(%arg0: i32) -> (i32, i32, i32) {
    %c0_i32 = arith.constant 0 : i32
    %c0_i32_0 = arith.constant 0 : i32
    %c0_i32_1 = arith.constant 0 : i32
    %c0_i32_2 = arith.constant 0 : i32
    return %c0_i32, %c0_i32_0, %c0_i32_1 : i32, i32, i32
  }
  func.func @transform_10(%arg0: i32) -> (i32, i32) {
    %c0_i32 = arith.constant 0 : i32
    %c0_i32_0 = arith.constant 0 : i32
    %c0_i32_1 = arith.constant 0 : i32
    return %c0_i32, %c0_i32_0 : i32, i32
  }
}

</mosaic_0001>

<llo_original>
// kernel: mul.13
$region0: #{mul.13}
  #allocation0 [shape = 's32[1]{0}', space=sflag, size = 0x4, scoped, tag = 'scoped memory for mul.13']
  %s0 = inlined_call_operand.vmem [shape: f32[14], index: 0, kind: input, shape index: {}]
  %s1 = inlined_call_operand.vmem [shape: f32[14], index: 1, kind: input, shape index: {}]
  %s2 = inlined_call_operand.vmem [shape: f32[14], index: 2, kind: output, shape index: {}]
  %v3 = vld [vmem:[%s0] sm:$0x1]
  %v4 = vld [vmem:[%s1] sm:$0x1]
  %5 = xla_tuple %v3, %v4
  %6 = xla_tuple %5
  %v7 = vmul.f32 %v3, %v4
  %8 = xla_tuple %v7
  %9 = vst [vmem:[%s2] sm:$0x1] %v7

// kernel: dense.1
$region0: #{dense.1}
  #allocation0 [shape = 'u32[]', space=smem, size = 0x4, offset = 0x4, fixed_abs, tag = 'smem constant byte address 0x4 - core index']
  #allocation1 [shape = 'u32[144,128]{1,0:T(1,128)}', space=vmem, size = 0x12000, scoped, tag = 'internal scratch']
  %s0 = inlined_call_operand.vmem [shape: f32[24,32], index: 0, kind: input, shape index: {}]
  %s1 = inlined_call_operand.vmem [shape: bf16[32,32], index: 1, kind: input, shape index: {}]
  %s2 = inlined_call_operand.vmem [shape: f32[1,32], index: 2, kind: input, shape index: {}]
  %s3 = inlined_call_operand.vmem [shape: bf16[24,24], index: 3, kind: input, shape index: {}]
  %s4 = inlined_call_operand.vmem [shape: bf16[24,24], index: 4, kind: input, shape index: {}]
  %s5 = inlined_call_operand.vmem [shape: f32[24,1], index: 5, kind: input, shape index: {}]
  %s6 = inlined_call_operand.vmem [shape: bf16[3,32,32], index: 6, kind: input, shape index: {}]
  %s7 = inlined_call_operand.vmem [shape: f32[3,1,32], index: 7, kind: input, shape index: {}]
  %s8 = inlined_call_operand.vmem [shape: bf16[4,32,32], index: 8, kind: input, shape index: {}]
  %s9 = inlined_call_operand.vmem [shape: f32[4,1,32], index: 9, kind: input, shape index: {}]
  %s10 = inlined_call_operand.vmem [shape: f32[24,160], index: 10, kind: output, shape index: {}]
  %s11 = sld [smem:[#allocation0]]
  $region50: #{dense.1} parent=0
    _
  %s13 = ssub.s32 1, %s11
  %s14 = scalar_select 0, %s13, %s11
  // Predicated region
  $region2: #{dense.1} parent=0 // pred_check
    _
  $region3: #{dense.1} parent=0 // pred_check_branch
    %16 = sbr.rel (0) target = $region5
  $region4: #{dense.1} parent=0 // pred_region
    _
  $region5: #{dense.1} parent=0 // pred_fallthru
    _
  // Predicated region
  $region6: #{dense.1} parent=0 // pred_check
    _
  $region7: #{dense.1} parent=0 // pred_check_branch
    %18 = sbr.rel (0) target = $region9
  $region8: #{dense.1} parent=0 // pred_region
    _
  $region9: #{dense.1} parent=0 // pred_fallthru
    _
  // Predicated region
  $region10: #{dense.1} parent=0 // pred_check
    _
  $region11: #{dense.1} parent=0 // pred_check_branch
    %20 = sbr.rel (0) target = $region13
  $region12: #{dense.1} parent=0 // pred_region
    _
  $region13: #{dense.1} parent=0 // pred_fallthru
    _
  // Predicated region
  $region14: #{dense.1} parent=0 // pred_check
    _
  $region15: #{dense.1} parent=0 // pred_check_branch
    %22 = sbr.rel (0) target = $region17
  $region16: #{dense.1} parent=0 // pred_region
    _
  $region17: #{dense.1} parent=0 // pred_fallthru
    _
  // Predicated region
  $region18: #{dense.1} parent=0 // pred_check
    _
  $region19: #{dense.1} parent=0 // pred_check_branch
    %24 = sbr.rel (0) target = $region21
  $region20: #{dense.1} parent=0 // pred_region
    _
  $region21: #{dense.1} parent=0 // pred_fallthru
    _
  // Predicated region
  $region22: #{dense.1} parent=0 // pred_check
    _
  $region23: #{dense.1} parent=0 // pred_check_branch
    %26 = sbr.rel (0) target = $region25
  $region24: #{dense.1} parent=0 // pred_region
    _
  $region25: #{dense.1} parent=0 // pred_fallthru
    _
  // Predicated region
  $region26: #{dense.1} parent=0 // pred_check
    _
  $region27: #{dense.1} parent=0 // pred_check_branch
    %28 = sbr.rel (0) target = $region29
  $region28: #{dense.1} parent=0 // pred_region
    _
  $region29: #{dense.1} parent=0 // pred_fallthru
    _
  // Predicated region
  $region30: #{dense.1} parent=0 // pred_check
    _
  $region31: #{dense.1} parent=0 // pred_check_branch
    %30 = sbr.rel (0) target = $region33
  $region32: #{dense.1} parent=0 // pred_region
    _
  $region33: #{dense.1} parent=0 // pred_fallthru
    _
  // Predicated region
  $region34: #{dense.1} parent=0 // pred_check
    _
  $region35: #{dense.1} parent=0 // pred_check_branch
    %32 = sbr.rel (0) target = $region37
  $region36: #{dense.1} parent=0 // pred_region
    _
  $region37: #{dense.1} parent=0 // pred_fallthru
    _
  // Predicated region
  $region38: #{dense.1} parent=0 // pred_check
    _
  $region39: #{dense.1} parent=0 // pred_check_branch
    %34 = sbr.rel (0) target = $region41
  $region40: #{dense.1} parent=0 // pred_region
    _
  $region41: #{dense.1} parent=0 // pred_fallthru
    _
  %v36 = vld [vmem:[%s0] sm:$0xff]
  %v37 = vld [vmem:[%s0 + $0x8] sm:$0xff]
  %v38 = vld [vmem:[%s0 + $0x10] sm:$0xff]
  %v39 = vpack.c.bf16 %v37, %v36
  %v40 = vpack.c.bf16 %v38, %v38
  %v41 = vld [vmem:[%s1] sm:$0xf]
  %v42 = vld [vmem:[%s1 + $0x4] sm:$0xf]
  %v43 = vld [vmem:[%s1 + $0x8] sm:$0xf]
  %v44 = vld [vmem:[%s1 + $0xc] sm:$0xf]
  %v45 = vld [vmem:[%s2] sm:$0x1]
  %v47 = vlaneseq
  %v48 = vshrl.u32 %v47, 7
  %v49 = vsub.s32 0, %v48
  %v50 = vrot.slane %v45, %v49
  %v56 = vunpack.c.l.b16 %v41
  %v57 = vunpack.c.l.b16 %v42
  %v58 = vunpack.c.l.b16 %v43
  %v59 = vunpack.c.l.b16 %v44
  %v60 = vpack.c.b16 %v57, %v56
  %v61 = vpack.c.b16 %v59, %v58
  %vm64 = vcmask 261120
  %v66 = vsel %vm64, %v39, 0
  %v69 = vsel %vm64, %v40, 0
  %71 = vmatprep.subr.bf16.mxu0 0
  %72 = vmatpush1.bf16.msra.mxu0 %v60
  %73 = vmatprep.subr.bf16.mxu0 0
  %74 = vmatpush1.bf16.msra.mxu0 %v61
  %75 = vmatprep.subr.bf16.mxu0 0
  %76 = vmatpush1.bf16.msra.mxu0 0
  %77 = vmatprep.subr.bf16.mxu0 0
  %78 = vmatpush1.bf16.msra.mxu0 0
  %79 = vmatprep.subr.bf16.mxu0 0
  %80 = vmatpush1.bf16.msra.mxu0 0
  %81 = vmatprep.subr.bf16.mxu0 0
  %82 = vmatpush1.bf16.msra.mxu0 0
  %83 = vmatprep.subr.bf16.mxu0 0
  %84 = vmatpush1.bf16.msra.mxu0 0
  %85 = vmatprep.subr.bf16.mxu0 0
  %86 = vmatpush1.bf16.msra.mxu0 0
  %87 = vmatprep.subr.bf16.mxu0 0
  %88 = vmatpush1.bf16.msra.mxu0 0
  %89 = vmatprep.subr.bf16.mxu0 0
  %90 = vmatpush1.bf16.msra.mxu0 0
  %91 = vmatprep.subr.bf16.mxu0 0
  %92 = vmatpush1.bf16.msra.mxu0 0
  %93 = vmatprep.subr.bf16.mxu0 0
  %94 = vmatpush1.bf16.msra.mxu0 0
  %95 = vmatprep.subr.bf16.mxu0 0
  %96 = vmatpush1.bf16.msra.mxu0 0
  %97 = vmatprep.subr.bf16.mxu0 0
  %98 = vmatpush1.bf16.msra.mxu0 0
  %99 = vmatprep.subr.bf16.mxu0 0
  %100 = vmatpush1.bf16.msra.mxu0 0
  %101 = vmatprep.subr.bf16.mxu0 0
  %102 = vmatpush1.bf16.msra.mxu0 0
  %103 = vmatprep.mubr.bf16.mxu0 0
  %104 = vmatmul.mubr.bf16.gmra.mrb[0].mxu0 %v66
  %v105 = vpop.f32.mrb[0].mxu0
  %v106 = vadd.f32 %v50, %v105
  %v107 = vpop.f32.mrb[0].mxu0
  %v108 = vpop.f32.mrb[0].mxu0
  %v109 = vadd.f32 %v50, %v108
  %v110 = vpop.f32.mrb[0].mxu0
  %111 = vmatprep.mubr.bf16.mxu0 0
  %112 = vmatmul.mubr.bf16.gmra.mrb[0].mxu0 %v69
  %v113 = vpop.f32.mrb[0].mxu0
  %v114 = vadd.f32 %v50, %v113
  %v115 = vpop.f32.mrb[0].mxu0
  %v116 = vpop.f32.mrb[0].mxu0
  %v117 = vpop.f32.mrb[0].mxu0
  %118 = vdwg.mxu0
  %v119 = vld [vmem:[%s3] sm:$0xf]
  %v120 = vld [vmem:[%s3 + $0x4] sm:$0xf]
  %v121 = vld [vmem:[%s3 + $0x8] sm:$0xf]
  %v122 = vpack.c.bf16 %v109, %v106
  %v123 = vpack.c.bf16 %v114, %v114
  %v124 = vld [vmem:[%s6] sm:$0xf]
  %v125 = vld [vmem:[%s6 + $0x4] sm:$0xf]
  %v126 = vld [vmem:[%s6 + $0x8] sm:$0xf]
  %v127 = vld [vmem:[%s6 + $0xc] sm:$0xf]
  %v132 = vunpack.c.l.b16 %v124
  %v133 = vunpack.c.l.b16 %v125
  %v134 = vunpack.c.l.b16 %v126
  %v135 = vunpack.c.l.b16 %v127
  %v136 = vpack.c.b16 %v133, %v132
  %v137 = vpack.c.b16 %v135, %v134
  %v141 = vsel %vm64, %v122, 0
  %v144 = vsel %vm64, %v123, 0
  %146 = vmatprep.subr.bf16.mxu0 0
  %147 = vmatpush1.bf16.msra.mxu0 %v136
  %148 = vmatprep.subr.bf16.mxu0 0
  %149 = vmatpush1.bf16.msra.mxu0 %v137
  %150 = vmatprep.subr.bf16.mxu0 0
  %151 = vmatpush1.bf16.msra.mxu0 0
  %152 = vmatprep.subr.bf16.mxu0 0
  %153 = vmatpush1.bf16.msra.mxu0 0
  %154 = vmatprep.subr.bf16.mxu0 0
  %155 = vmatpush1.bf16.msra.mxu0 0
  %156 = vmatprep.subr.bf16.mxu0 0
  %157 = vmatpush1.bf16.msra.mxu0 0
  %158 = vmatprep.subr.bf16.mxu0 0
  %159 = vmatpush1.bf16.msra.mxu0 0
  %160 = vmatprep.subr.bf16.mxu0 0
  %161 = vmatpush1.bf16.msra.mxu0 0
  %162 = vmatprep.subr.bf16.mxu0 0
  %163 = vmatpush1.bf16.msra.mxu0 0
  %164 = vmatprep.subr.bf16.mxu0 0
  %165 = vmatpush1.bf16.msra.mxu0 0
  %166 = vmatprep.subr.bf16.mxu0 0
  %167 = vmatpush1.bf16.msra.mxu0 0
  %168 = vmatprep.subr.bf16.mxu0 0
  %169 = vmatpush1.bf16.msra.mxu0 0
  %170 = vmatprep.subr.bf16.mxu0 0
  %171 = vmatpush1.bf16.msra.mxu0 0
  %172 = vmatprep.subr.bf16.mxu0 0
  %173 = vmatpush1.bf16.msra.mxu0 0
  %174 = vmatprep.subr.bf16.mxu0 0
  %175 = vmatpush1.bf16.msra.mxu0 0
  %176 = vmatprep.subr.bf16.mxu0 0
  %177 = vmatpush1.bf16.msra.mxu0 0
  %178 = vmatprep.mubr.bf16.mxu0 0
  %179 = vmatmul.mubr.bf16.gmra.mrb[0].mxu0 %v141
  %v180 = vpop.f32.mrb[0].mxu0
  %v181 = vadd.f32 0.0, %v180
  %v182 = vpop.f32.mrb[0].mxu0
  %v183 = vpop.f32.mrb[0].mxu0
  %v184 = vadd.f32 0.0, %v183
  %v185 = vpop.f32.mrb[0].mxu0
  %186 = vmatprep.mubr.bf16.mxu0 0
  %187 = vmatmul.mubr.bf16.gmra.mrb[0].mxu0 %v144
  %v188 = vpop.f32.mrb[0].mxu0
  %v189 = vadd.f32 0.0, %v188
  %v190 = vpop.f32.mrb[0].mxu0
  %v191 = vpop.f32.mrb[0].mxu0
  %v192 = vpop.f32.mrb[0].mxu0
  %193 = vdwg.mxu0
  %v194 = vpack.c.bf16 %v184, %v181
  %v195 = vpack.c.bf16 %v189, %v189
  %v196 = vld [vmem:[%s7] sm:$0x1]
  %v198 = vlaneseq
  %v199 = vshrl.u32 %v198, 7
  %v200 = vsub.s32 0, %v199
  %v201 = vrot.slane %v196, %v200
  %v206 = vunpack.c.l.b16 %v119
  %v207 = vunpack.c.l.b16 %v120
  %v208 = vunpack.c.l.b16 %v121
  %v209 = vpack.c.b16 %v207, %v206
  %v210 = vpack.c.b16 %v208, %v208
  %vm211 = vcmask 195584
  %v213 = vsel %vm211, %v209, 0
  %v216 = vsel %vm211, %v210, 0
  %vm218 = vcmask 1043456
  %v220 = vsel %vm218, %v195, 0
  %222 = vmatprep.subr.bf16.mxu0 0
  %223 = vmatpush1.bf16.msra.mxu0 %v194
  %224 = vmatprep.subr.bf16.mxu0 0
  %225 = vmatpush1.bf16.msra.mxu0 %v220
  %226 = vmatprep.subr.bf16.mxu0 0
  %227 = vmatpush1.bf16.msra.mxu0 0
  %228 = vmatprep.subr.bf16.mxu0 0
  %229 = vmatpush1.bf16.msra.mxu0 0
  %230 = vmatprep.subr.bf16.mxu0 0
  %231 = vmatpush1.bf16.msra.mxu0 0
  %232 = vmatprep.subr.bf16.mxu0 0
  %233 = vmatpush1.bf16.msra.mxu0 0
  %234 = vmatprep.subr.bf16.mxu0 0
  %235 = vmatpush1.bf16.msra.mxu0 0
  %236 = vmatprep.subr.bf16.mxu0 0
  %237 = vmatpush1.bf16.msra.mxu0 0
  %238 = vmatprep.subr.bf16.mxu0 0
  %239 = vmatpush1.bf16.msra.mxu0 0
  %240 = vmatprep.subr.bf16.mxu0 0
  %241 = vmatpush1.bf16.msra.mxu0 0
  %242 = vmatprep.subr.bf16.mxu0 0
  %243 = vmatpush1.bf16.msra.mxu0 0
  %244 = vmatprep.subr.bf16.mxu0 0
  %245 = vmatpush1.bf16.msra.mxu0 0
  %246 = vmatprep.subr.bf16.mxu0 0
  %247 = vmatpush1.bf16.msra.mxu0 0
  %248 = vmatprep.subr.bf16.mxu0 0
  %249 = vmatpush1.bf16.msra.mxu0 0
  %250 = vmatprep.subr.bf16.mxu0 0
  %251 = vmatpush1.bf16.msra.mxu0 0
  %252 = vmatprep.subr.bf16.mxu0 0
  %253 = vmatpush1.bf16.msra.mxu0 0
  %254 = vmatprep.mubr.bf16.mxu0 0
  %255 = vmatmul.mubr.bf16.gmra.mrb[0].mxu0 %v213
  %v256 = vpop.f32.mrb[0].mxu0
  %v257 = vadd.f32 %v201, %v256
  %v258 = vpop.f32.mrb[0].mxu0
  %v259 = vpop.f32.mrb[0].mxu0
  %v260 = vadd.f32 %v201, %v259
  %v261 = vpop.f32.mrb[0].mxu0
  %262 = vmatprep.mubr.bf16.mxu0 0
  %263 = vmatmul.mubr.bf16.gmra.mrb[0].mxu0 %v216
  %v264 = vpop.f32.mrb[0].mxu0
  %v265 = vadd.f32 %v201, %v264
  %v266 = vpop.f32.mrb[0].mxu0
  %v267 = vpop.f32.mrb[0].mxu0
  %v268 = vpop.f32.mrb[0].mxu0
  %269 = vdwg.mxu0
  %v270 = vpack.c.bf16 %v260, %v257
  %v271 = vpack.c.bf16 %v265, %v265
  %s272 = scalar_lea.vmem %s6, 16
  %v273 = vld [vmem:[%s272] sm:$0xf]
  %v274 = vld [vmem:[%s272 + $0x4] sm:$0xf]
  %v275 = vld [vmem:[%s272 + $0x8] sm:$0xf]
  %v276 = vld [vmem:[%s272 + $0xc] sm:$0xf]
  %v281 = vunpack.c.l.b16 %v273
  %v282 = vunpack.c.l.b16 %v274
  %v283 = vunpack.c.l.b16 %v275
  %v284 = vunpack.c.l.b16 %v276
  %v285 = vpack.c.b16 %v282, %v281
  %v286 = vpack.c.b16 %v284, %v283
  %v290 = vsel %vm64, %v270, 0
  %v293 = vsel %vm64, %v271, 0
  %295 = vmatprep.subr.bf16.mxu0 0
  %296 = vmatpush1.bf16.msra.mxu0 %v285
  %297 = vmatprep.subr.bf16.mxu0 0
  %298 = vmatpush1.bf16.msra.mxu0 %v286
  %299 = vmatprep.subr.bf16.mxu0 0
  %300 = vmatpush1.bf16.msra.mxu0 0
  %301 = vmatprep.subr.bf16.mxu0 0
  %302 = vmatpush1.bf16.msra.mxu0 0
  %303 = vmatprep.subr.bf16.mxu0 0
  %304 = vmatpush1.bf16.msra.mxu0 0
  %305 = vmatprep.subr.bf16.mxu0 0
  %306 = vmatpush1.bf16.msra.mxu0 0
  %307 = vmatprep.subr.bf16.mxu0 0
  %308 = vmatpush1.bf16.msra.mxu0 0
  %309 = vmatprep.subr.bf16.mxu0 0
  %310 = vmatpush1.bf16.msra.mxu0 0
  %311 = vmatprep.subr.bf16.mxu0 0
  %312 = vmatpush1.bf16.msra.mxu0 0
  %313 = vmatprep.subr.bf16.mxu0 0
  %314 = vmatpush1.bf16.msra.mxu0 0
  %315 = vmatprep.subr.bf16.mxu0 0
  %316 = vmatpush1.bf16.msra.mxu0 0
  %317 = vmatprep.subr.bf16.mxu0 0
  %318 = vmatpush1.bf16.msra.mxu0 0
  %319 = vmatprep.subr.bf16.mxu0 0
  %320 = vmatpush1.bf16.msra.mxu0 0
  %321 = vmatprep.subr.bf16.mxu0 0
  %322 = vmatpush1.bf16.msra.mxu0 0
  %323 = vmatprep.subr.bf16.mxu0 0
  %324 = vmatpush1.bf16.msra.mxu0 0
  %325 = vmatprep.subr.bf16.mxu0 0
  %326 = vmatpush1.bf16.msra.mxu0 0
  %327 = vmatprep.mubr.bf16.mxu0 0
  %328 = vmatmul.mubr.bf16.gmra.mrb[0].mxu0 %v290
  %v329 = vpop.f32.mrb[0].mxu0
  %v330 = vadd.f32 0.0, %v329
  %v331 = vpop.f32.mrb[0].mxu0
  %v332 = vpop.f32.mrb[0].mxu0
  %v333 = vadd.f32 0.0, %v332
  %v334 = vpop.f32.mrb[0].mxu0
  %335 = vmatprep.mubr.bf16.mxu0 0
  %336 = vmatmul.mubr.bf16.gmra.mrb[0].mxu0 %v293
  %v337 = vpop.f32.mrb[0].mxu0
  %v338 = vadd.f32 0.0, %v337
  %v339 = vpop.f32.mrb[0].mxu0
  %v340 = vpop.f32.mrb[0].mxu0
  %v341 = vpop.f32.mrb[0].mxu0
  %342 = vdwg.mxu0
  %v343 = vpack.c.bf16 %v333, %v330
  %v344 = vpack.c.bf16 %v338, %v338
  %s345 = scalar_lea.vmem %s7, 1
  %v346 = vld [vmem:[%s345] sm:$0x1]
  %v348 = vlaneseq
  %v349 = vshrl.u32 %v348, 7
  %v350 = vsub.s32 0, %v349
  %v351 = vrot.slane %v346, %v350
  %v354 = vsel %vm218, %v344, 0
  %356 = vmatprep.subr.bf16.mxu0 0
  %357 = vmatpush1.bf16.msra.mxu0 %v343
  %358 = vmatprep.subr.bf16.mxu0 0
  %359 = vmatpush1.bf16.msra.mxu0 %v354
  %360 = vmatprep.subr.bf16.mxu0 0
  %361 = vmatpush1.bf16.msra.mxu0 0
  %362 = vmatprep.subr.bf16.mxu0 0
  %363 = vmatpush1.bf16.msra.mxu0 0
  %364 = vmatprep.subr.bf16.mxu0 0
  %365 = vmatpush1.bf16.msra.mxu0 0
  %366 = vmatprep.subr.bf16.mxu0 0
  %367 = vmatpush1.bf16.msra.mxu0 0
  %368 = vmatprep.subr.bf16.mxu0 0
  %369 = vmatpush1.bf16.msra.mxu0 0
  %370 = vmatprep.subr.bf16.mxu0 0
  %371 = vmatpush1.bf16.msra.mxu0 0
  %372 = vmatprep.subr.bf16.mxu0 0
  %373 = vmatpush1.bf16.msra.mxu0 0
  %374 = vmatprep.subr.bf16.mxu0 0
  %375 = vmatpush1.bf16.msra.mxu0 0
  %376 = vmatprep.subr.bf16.mxu0 0
  %377 = vmatpush1.bf16.msra.mxu0 0
  %378 = vmatprep.subr.bf16.mxu0 0
  %379 = vmatpush1.bf16.msra.mxu0 0
  %380 = vmatprep.subr.bf16.mxu0 0
  %381 = vmatpush1.bf16.msra.mxu0 0
  %382 = vmatprep.subr.bf16.mxu0 0
  %383 = vmatpush1.bf16.msra.mxu0 0
  %384 = vmatprep.subr.bf16.mxu0 0
  %385 = vmatpush1.bf16.msra.mxu0 0
  %386 = vmatprep.subr.bf16.mxu0 0
  %387 = vmatpush1.bf16.msra.mxu0 0
  %388 = vmatprep.mubr.bf16.mxu0 0
  %389 = vmatmul.mubr.bf16.gmra.mrb[0].mxu0 %v213
  %v390 = vpop.f32.mrb[0].mxu0
  %v391 = vadd.f32 %v351, %v390
  %v392 = vpop.f32.mrb[0].mxu0
  %v393 = vpop.f32.mrb[0].mxu0
  %v394 = vadd.f32 %v351, %v393
  %v395 = vpop.f32.mrb[0].mxu0
  %396 = vmatprep.mubr.bf16.mxu0 0
  %397 = vmatmul.mubr.bf16.gmra.mrb[0].mxu0 %v216
  %v398 = vpop.f32.mrb[0].mxu0
  %v399 = vadd.f32 %v351, %v398
  %v400 = vpop.f32.mrb[0].mxu0
  %v401 = vpop.f32.mrb[0].mxu0
  %v402 = vpop.f32.mrb[0].mxu0
  %403 = vdwg.mxu0
  %v404 = vpack.c.bf16 %v394, %v391
  %v405 = vpack.c.bf16 %v399, %v399
  %s406 = scalar_lea.vmem %s6, 32
  %v407 = vld [vmem:[%s406] sm:$0xf]
  %v408 = vld [vmem:[%s406 + $0x4] sm:$0xf]
  %v409 = vld [vmem:[%s406 + $0x8] sm:$0xf]
  %v410 = vld [vmem:[%s406 + $0xc] sm:$0xf]
  %v415 = vunpack.c.l.b16 %v407
  %v416 = vunpack.c.l.b16 %v408
  %v417 = vunpack.c.l.b16 %v409
  %v418 = vunpack.c.l.b16 %v410
  %v419 = vpack.c.b16 %v416, %v415
  %v420 = vpack.c.b16 %v418, %v417
  %v424 = vsel %vm64, %v404, 0
  %v427 = vsel %vm64, %v405, 0
  %429 = vmatprep.subr.bf16.mxu0 0
  %430 = vmatpush1.bf16.msra.mxu0 %v419
  %431 = vmatprep.subr.bf16.mxu0 0
  %432 = vmatpush1.bf16.msra.mxu0 %v420
  %433 = vmatprep.subr.bf16.mxu0 0
  %434 = vmatpush1.bf16.msra.mxu0 0
  %435 = vmatprep.subr.bf16.mxu0 0
  %436 = vmatpush1.bf16.msra.mxu0 0
  %437 = vmatprep.subr.bf16.mxu0 0
  %438 = vmatpush1.bf16.msra.mxu0 0
  %439 = vmatprep.subr.bf16.mxu0 0
  %440 = vmatpush1.bf16.msra.mxu0 0
  %441 = vmatprep.subr.bf16.mxu0 0
  %442 = vmatpush1.bf16.msra.mxu0 0
  %443 = vmatprep.subr.bf16.mxu0 0
  %444 = vmatpush1.bf16.msra.mxu0 0
  %445 = vmatprep.subr.bf16.mxu0 0
  %446 = vmatpush1.bf16.msra.mxu0 0
  %447 = vmatprep.subr.bf16.mxu0 0
  %448 = vmatpush1.bf16.msra.mxu0 0
  %449 = vmatprep.subr.bf16.mxu0 0
  %450 = vmatpush1.bf16.msra.mxu0 0
  %451 = vmatprep.subr.bf16.mxu0 0
  %452 = vmatpush1.bf16.msra.mxu0 0
  %453 = vmatprep.subr.bf16.mxu0 0
  %454 = vmatpush1.bf16.msra.mxu0 0
  %455 = vmatprep.subr.bf16.mxu0 0
  %456 = vmatpush1.bf16.msra.mxu0 0
  %457 = vmatprep.subr.bf16.mxu0 0
  %458 = vmatpush1.bf16.msra.mxu0 0
  %459 = vmatprep.subr.bf16.mxu0 0
  %460 = vmatpush1.bf16.msra.mxu0 0
  %461 = vmatprep.mubr.bf16.mxu0 0
  %462 = vmatmul.mubr.bf16.gmra.mrb[0].mxu0 %v424
  %v463 = vpop.f32.mrb[0].mxu0
  %v464 = vadd.f32 0.0, %v463
  %v465 = vpop.f32.mrb[0].mxu0
  %v466 = vpop.f32.mrb[0].mxu0
  %v467 = vadd.f32 0.0, %v466
  %v468 = vpop.f32.mrb[0].mxu0
  %469 = vmatprep.mubr.bf16.mxu0 0
  %470 = vmatmul.mubr.bf16.gmra.mrb[0].mxu0 %v427
  %v471 = vpop.f32.mrb[0].mxu0
  %v472 = vadd.f32 0.0, %v471
  %v473 = vpop.f32.mrb[0].mxu0
  %v474 = vpop.f32.mrb[0].mxu0
  %v475 = vpop.f32.mrb[0].mxu0
  %476 = vdwg.mxu0
  %v477 = vpack.c.bf16 %v467, %v464
  %v478 = vpack.c.bf16 %v472, %v472
  %s479 = scalar_lea.vmem %s7, 2
  %v480 = vld [vmem:[%s479] sm:$0x1]
  %v482 = vlaneseq
  %v483 = vshrl.u32 %v482, 7
  %v484 = vsub.s32 0, %v483
  %v485 = vrot.slane %v480, %v484
  %v488 = vsel %vm218, %v478, 0
  %490 = vmatprep.subr.bf16.mxu0 0
  %491 = vmatpush1.bf16.msra.mxu0 %v477
  %492 = vmatprep.subr.bf16.mxu0 0
  %493 = vmatpush1.bf16.msra.mxu0 %v488
  %494 = vmatprep.subr.bf16.mxu0 0
  %495 = vmatpush1.bf16.msra.mxu0 0
  %496 = vmatprep.subr.bf16.mxu0 0
  %497 = vmatpush1.bf16.msra.mxu0 0
  %498 = vmatprep.subr.bf16.mxu0 0
  %499 = vmatpush1.bf16.msra.mxu0 0
  %500 = vmatprep.subr.bf16.mxu0 0
  %501 = vmatpush1.bf16.msra.mxu0 0
  %502 = vmatprep.subr.bf16.mxu0 0
  %503 = vmatpush1.bf16.msra.mxu0 0
  %504 = vmatprep.subr.bf16.mxu0 0
  %505 = vmatpush1.bf16.msra.mxu0 0
  %506 = vmatprep.subr.bf16.mxu0 0
  %507 = vmatpush1.bf16.msra.mxu0 0
  %508 = vmatprep.subr.bf16.mxu0 0
  %509 = vmatpush1.bf16.msra.mxu0 0
  %510 = vmatprep.subr.bf16.mxu0 0
  %511 = vmatpush1.bf16.msra.mxu0 0
  %512 = vmatprep.subr.bf16.mxu0 0
  %513 = vmatpush1.bf16.msra.mxu0 0
  %514 = vmatprep.subr.bf16.mxu0 0
  %515 = vmatpush1.bf16.msra.mxu0 0
  %516 = vmatprep.subr.bf16.mxu0 0
  %517 = vmatpush1.bf16.msra.mxu0 0
  %518 = vmatprep.subr.bf16.mxu0 0
  %519 = vmatpush1.bf16.msra.mxu0 0
  %520 = vmatprep.subr.bf16.mxu0 0
  %521 = vmatpush1.bf16.msra.mxu0 0
  %522 = vmatprep.mubr.bf16.mxu0 0
  %523 = vmatmul.mubr.bf16.gmra.mrb[0].mxu0 %v213
  %v524 = vpop.f32.mrb[0].mxu0
  %v525 = vadd.f32 %v485, %v524
  %v526 = vpop.f32.mrb[0].mxu0
  %v527 = vpop.f32.mrb[0].mxu0
  %v528 = vadd.f32 %v485, %v527
  %v529 = vpop.f32.mrb[0].mxu0
  %530 = vmatprep.mubr.bf16.mxu0 0
  %531 = vmatmul.mubr.bf16.gmra.mrb[0].mxu0 %v216
  %v532 = vpop.f32.mrb[0].mxu0
  %v533 = vadd.f32 %v485, %v532
  %v534 = vpop.f32.mrb[0].mxu0
  %v535 = vpop.f32.mrb[0].mxu0
  %v536 = vpop.f32.mrb[0].mxu0
  %537 = vdwg.mxu0
  %v538 = vmul.f32 %v106, %v106
  %v539 = vmul.f32 %v109, %v109
  %v540 = vmul.f32 %v114, %v114
  %v541 = vsel %vm64, %v538, 0.0
  %542 = vadd.xlane.f32.xlu0 %v541
  %v543 = vpop.xlane.xlu0 %542
  %v544 = vsel %vm64, %v539, 0.0
  %545 = vadd.xlane.f32.xlu0 %v544
  %v546 = vpop.xlane.xlu0 %545
  %v547 = vsel %vm64, %v540, 0.0
  %548 = vadd.xlane.f32.xlu0 %v547
  %v549 = vpop.xlane.xlu0 %548
  %v550 = vadd.f32 %v543, 1e-12
  %v551 = vadd.f32 %v546, 1e-12
  %v552 = vadd.f32 %v549, 1e-12
  %v553 = vrsqrt.pop %v550
  %v554 = vrsqrt.pop %v551
  %v555 = vrsqrt.pop %v552
  %v556 = vmul.f32 %v106, %v553
  %v557 = vmul.f32 %v109, %v554
  %v558 = vmul.f32 %v114, %v555
  %v559 = vpack.c.bf16 %v557, %v556
  %v560 = vpack.c.bf16 %v558, %v558
  %v562 = vsel %vm64, %v559, 0
  %v565 = vsel %vm64, %v560, 0
  %567 = vmatprep.subr.bf16.mxu0 0
  %568 = vmatpush1.bf16.xpose.msra.mxu0 %v562
  %569 = vmatprep.subr.bf16.mxu0 0
  %570 = vmatpush1.bf16.xpose.msra.mxu0 %v565
  %571 = vmatprep.subr.bf16.mxu0 0
  %572 = vmatpush1.bf16.xpose.msra.mxu0 0
  %573 = vmatprep.subr.bf16.mxu0 0
  %574 = vmatpush1.bf16.xpose.msra.mxu0 0
  %575 = vmatprep.subr.bf16.mxu0 0
  %576 = vmatpush1.bf16.xpose.msra.mxu0 0
  %577 = vmatprep.subr.bf16.mxu0 0
  %578 = vmatpush1.bf16.xpose.msra.mxu0 0
  %579 = vmatprep.subr.bf16.mxu0 0
  %580 = vmatpush1.bf16.xpose.msra.mxu0 0
  %581 = vmatprep.subr.bf16.mxu0 0
  %582 = vmatpush1.bf16.xpose.msra.mxu0 0
  %583 = vmatprep.subr.bf16.mxu0 0
  %584 = vmatpush1.bf16.xpose.msra.mxu0 0
  %585 = vmatprep.subr.bf16.mxu0 0
  %586 = vmatpush1.bf16.xpose.msra.mxu0 0
  %587 = vmatprep.subr.bf16.mxu0 0
  %588 = vmatpush1.bf16.xpose.msra.mxu0 0
  %589 = vmatprep.subr.bf16.mxu0 0
  %590 = vmatpush1.bf16.xpose.msra.mxu0 0
  %591 = vmatprep.subr.bf16.mxu0 0
  %592 = vmatpush1.bf16.xpose.msra.mxu0 0
  %593 = vmatprep.subr.bf16.mxu0 0
  %594 = vmatpush1.bf16.xpose.msra.mxu0 0
  %595 = vmatprep.subr.bf16.mxu0 0
  %596 = vmatpush1.bf16.xpose.msra.mxu0 0
  %597 = vmatprep.subr.bf16.mxu0 0
  %598 = vmatpush1.bf16.xpose.msra.mxu0 0
  %599 = vmatprep.mubr.bf16.mxu0 0
  %600 = vmatmul.mubr.bf16.gmra.mrb[0].mxu0 %v562
  %v601 = vpop.f32.mrb[0].mxu0
  %v602 = vadd.f32 0.0, %v601
  %v603 = vpop.f32.mrb[0].mxu0
  %v604 = vpop.f32.mrb[0].mxu0
  %v605 = vadd.f32 0.0, %v604
  %v606 = vpop.f32.mrb[0].mxu0
  %607 = vmatprep.mubr.bf16.mxu0 0
  %608 = vmatmul.mubr.bf16.gmra.mrb[0].mxu0 %v565
  %v609 = vpop.f32.mrb[0].mxu0
  %v610 = vadd.f32 0.0, %v609
  %v611 = vpop.f32.mrb[0].mxu0
  %v612 = vpop.f32.mrb[0].mxu0
  %v613 = vpop.f32.mrb[0].mxu0
  %614 = vdwg.mxu0
  %v615 = vmul.f32 %v602, 1.442695
  %v616 = vpow.pop %v615
  %v617 = vmul.f32 %v605, 1.442695
  %v618 = vpow.pop %v617
  %v619 = vmul.f32 %v610, 1.442695
  %v620 = vpow.pop %v619
  %v621 = vsel %vm211, %v616, 0.0
  %622 = vadd.xlane.f32.xlu0 %v621
  %v623 = vpop.xlane.xlu0 %622
  %v624 = vsel %vm211, %v618, 0.0
  %625 = vadd.xlane.f32.xlu0 %v624
  %v626 = vpop.xlane.xlu0 %625
  %v627 = vsel %vm211, %v620, 0.0
  %628 = vadd.xlane.f32.xlu0 %v627
  %v629 = vpop.xlane.xlu0 %628
  %v630 = vrcp.pop %v623
  %v631 = vmul.f32 %v616, %v630
  %v632 = vrcp.pop %v626
  %v633 = vmul.f32 %v618, %v632
  %v634 = vrcp.pop %v629
  %v635 = vmul.f32 %v620, %v634
  %v636 = vpack.c.bf16 %v633, %v631
  %v637 = vpack.c.bf16 %v635, %v635
  %v639 = vsel %vm211, %v636, 0
  %v642 = vsel %vm211, %v637, 0
  %v644 = vsel %vm218, %v123, 0
  %646 = vmatprep.subr.bf16.mxu0 0
  %647 = vmatpush1.bf16.msra.mxu0 %v122
  %648 = vmatprep.subr.bf16.mxu0 0
  %649 = vmatpush1.bf16.msra.mxu0 %v644
  %650 = vmatprep.subr.bf16.mxu0 0
  %651 = vmatpush1.bf16.msra.mxu0 0
  %652 = vmatprep.subr.bf16.mxu0 0
  %653 = vmatpush1.bf16.msra.mxu0 0
  %654 = vmatprep.subr.bf16.mxu0 0
  %655 = vmatpush1.bf16.msra.mxu0 0
  %656 = vmatprep.subr.bf16.mxu0 0
  %657 = vmatpush1.bf16.msra.mxu0 0
  %658 = vmatprep.subr.bf16.mxu0 0
  %659 = vmatpush1.bf16.msra.mxu0 0
  %660 = vmatprep.subr.bf16.mxu0 0
  %661 = vmatpush1.bf16.msra.mxu0 0
  %662 = vmatprep.subr.bf16.mxu0 0
  %663 = vmatpush1.bf16.msra.mxu0 0
  %664 = vmatprep.subr.bf16.mxu0 0
  %665 = vmatpush1.bf16.msra.mxu0 0
  %666 = vmatprep.subr.bf16.mxu0 0
  %667 = vmatpush1.bf16.msra.mxu0 0
  %668 = vmatprep.subr.bf16.mxu0 0
  %669 = vmatpush1.bf16.msra.mxu0 0
  %670 = vmatprep.subr.bf16.mxu0 0
  %671 = vmatpush1.bf16.msra.mxu0 0
  %672 = vmatprep.subr.bf16.mxu0 0
  %673 = vmatpush1.bf16.msra.mxu0 0
  %674 = vmatprep.subr.bf16.mxu0 0
  %675 = vmatpush1.bf16.msra.mxu0 0
  %676 = vmatprep.subr.bf16.mxu0 0
  %677 = vmatpush1.bf16.msra.mxu0 0
  %678 = vmatprep.mubr.bf16.mxu0 0
  %679 = vmatmul.mubr.bf16.gmra.mrb[0].mxu0 %v639
  %v680 = vpop.f32.mrb[0].mxu0
  %v681 = vadd.f32 0.0, %v680
  %v682 = vpop.f32.mrb[0].mxu0
  %v683 = vpop.f32.mrb[0].mxu0
  %v684 = vadd.f32 0.0, %v683
  %v685 = vpop.f32.mrb[0].mxu0
  %686 = vmatprep.mubr.bf16.mxu0 0
  %687 = vmatmul.mubr.bf16.gmra.mrb[0].mxu0 %v642
  %v688 = vpop.f32.mrb[0].mxu0
  %v689 = vadd.f32 0.0, %v688
  %v690 = vpop.f32.mrb[0].mxu0
  %v691 = vpop.f32.mrb[0].mxu0
  %v692 = vpop.f32.mrb[0].mxu0
  %693 = vdwg.mxu0
  %v694 = vld [vmem:[%s5] sm:$0xff]
  %v695 = vld [vmem:[%s5 + $0x8] sm:$0xff]
  %v696 = vld [vmem:[%s5 + $0x10] sm:$0xff]
  %698 = vset.pattern.permute.xlu0 0
  %699 = vperm.xlu0 %698, %v694
  %v700 = vpop.permute.xlu0 %699
  %703 = vset.pattern.permute.xlu0 0
  %704 = vperm.xlu0 %703, %v695
  %v705 = vpop.permute.xlu0 %704
  %708 = vset.pattern.permute.xlu0 0
  %709 = vperm.xlu0 %708, %v696
  %v710 = vpop.permute.xlu0 %709
  %v712 = vmul.f32 %v700, %v106
  %v713 = vmul.f32 %v705, %v109
  %v714 = vmul.f32 %v710, %v114
  %v715 = vld [vmem:[%s4] sm:$0xf]
  %v716 = vld [vmem:[%s4 + $0x4] sm:$0xf]
  %v717 = vld [vmem:[%s4 + $0x8] sm:$0xf]
  %v718 = vpack.c.bf16 %v681, %v114
  %v719 = vpack.c.bf16 %v689, %v684
  %v720 = vpack.c.bf16 %v713, %v712
  %v721 = vpack.c.bf16 %v714, %v714
  %v722 = vld [vmem:[%s8] sm:$0xf]
  %v723 = vld [vmem:[%s8 + $0x4] sm:$0xf]
  %v724 = vld [vmem:[%s8 + $0x8] sm:$0xf]
  %v725 = vld [vmem:[%s8 + $0xc] sm:$0xf]
  %v730 = vunpack.c.l.b16 %v722
  %v731 = vunpack.c.l.b16 %v723
  %v732 = vunpack.c.l.b16 %v724
  %v733 = vunpack.c.l.b16 %v725
  %v734 = vpack.c.b16 %v731, %v730
  %v735 = vpack.c.b16 %v733, %v732
  %v739 = vsel %vm64, %v718, 0
  %v742 = vsel %vm64, %v719, 0
  %v745 = vsel %vm64, %v720, 0
  %v748 = vsel %vm64, %v721, 0
  %750 = vmatprep.subr.bf16.mxu0 0
  %751 = vmatpush1.bf16.msra.mxu0 %v734
  %752 = vmatprep.subr.bf16.mxu0 0
  %753 = vmatpush1.bf16.msra.mxu0 %v735
  %754 = vmatprep.subr.bf16.mxu0 0
  %755 = vmatpush1.bf16.msra.mxu0 0
  %756 = vmatprep.subr.bf16.mxu0 0
  %757 = vmatpush1.bf16.msra.mxu0 0
  %758 = vmatprep.subr.bf16.mxu0 0
  %759 = vmatpush1.bf16.msra.mxu0 0
  %760 = vmatprep.subr.bf16.mxu0 0
  %761 = vmatpush1.bf16.msra.mxu0 0
  %762 = vmatprep.subr.bf16.mxu0 0
  %763 = vmatpush1.bf16.msra.mxu0 0
  %764 = vmatprep.subr.bf16.mxu0 0
  %765 = vmatpush1.bf16.msra.mxu0 0
  %766 = vmatprep.subr.bf16.mxu0 0
  %767 = vmatpush1.bf16.msra.mxu0 0
  %768 = vmatprep.subr.bf16.mxu0 0
  %769 = vmatpush1.bf16.msra.mxu0 0
  %770 = vmatprep.subr.bf16.mxu0 0
  %771 = vmatpush1.bf16.msra.mxu0 0
  %772 = vmatprep.subr.bf16.mxu0 0
  %773 = vmatpush1.bf16.msra.mxu0 0
  %774 = vmatprep.subr.bf16.mxu0 0
  %775 = vmatpush1.bf16.msra.mxu0 0
  %776 = vmatprep.subr.bf16.mxu0 0
  %777 = vmatpush1.bf16.msra.mxu0 0
  %778 = vmatprep.subr.bf16.mxu0 0
  %779 = vmatpush1.bf16.msra.mxu0 0
  %780 = vmatprep.subr.bf16.mxu0 0
  %781 = vmatpush1.bf16.msra.mxu0 0
  %782 = vmatprep.mubr.bf16.mxu0 0
  %783 = vmatmul.mubr.bf16.gmra.mrb[0].mxu0 %v141
  %v784 = vpop.f32.mrb[0].mxu0
  %v785 = vadd.f32 0.0, %v784
  %v786 = vpop.f32.mrb[0].mxu0
  %v787 = vpop.f32.mrb[0].mxu0
  %v788 = vadd.f32 0.0, %v787
  %v789 = vpop.f32.mrb[0].mxu0
  %790 = vmatprep.mubr.bf16.mxu0 0
  %791 = vmatmul.mubr.bf16.gmra.mrb[0].mxu0 %v739
  %v792 = vpop.f32.mrb[0].mxu0
  %v793 = vadd.f32 0.0, %v792
  %v794 = vpop.f32.mrb[0].mxu0
  %v795 = vpop.f32.mrb[0].mxu0
  %v796 = vadd.f32 0.0, %v795
  %v797 = vpop.f32.mrb[0].mxu0
  %798 = vmatprep.mubr.bf16.mxu0 0
  %799 = vmatmul.mubr.bf16.gmra.mrb[0].mxu0 %v742
  %v800 = vpop.f32.mrb[0].mxu0
  %v801 = vadd.f32 0.0, %v800
  %v802 = vpop.f32.mrb[0].mxu0
  %v803 = vpop.f32.mrb[0].mxu0
  %v804 = vadd.f32 0.0, %v803
  %v805 = vpop.f32.mrb[0].mxu0
  %806 = vmatprep.mubr.bf16.mxu0 0
  %807 = vmatmul.mubr.bf16.gmra.mrb[0].mxu0 %v745
  %v808 = vpop.f32.mrb[0].mxu0
  %v809 = vadd.f32 0.0, %v808
  %v810 = vpop.f32.mrb[0].mxu0
  %v811 = vpop.f32.mrb[0].mxu0
  %v812 = vadd.f32 0.0, %v811
  %v813 = vpop.f32.mrb[0].mxu0
  %814 = vmatprep.mubr.bf16.mxu0 0
  %815 = vmatmul.mubr.bf16.gmra.mrb[0].mxu0 %v748
  %v816 = vpop.f32.mrb[0].mxu0
  %v817 = vadd.f32 0.0, %v816
  %v818 = vpop.f32.mrb[0].mxu0
  %v819 = vpop.f32.mrb[0].mxu0
  %v820 = vpop.f32.mrb[0].mxu0
  %821 = vdwg.mxu0
  %v822 = vpack.c.bf16 %v788, %v785
  %v823 = vpack.c.bf16 %v796, %v793
  %v824 = vpack.c.bf16 %v804, %v801
  %v825 = vpack.c.bf16 %v812, %v809
  %v826 = vpack.c.bf16 %v817, %v817
  %v830 = vunpack.c.l.b16 %v715
  %v831 = vunpack.c.l.b16 %v716
  %v832 = vunpack.c.l.b16 %v717
  %v833 = vpack.c.b16 %v831, %v830
  %v834 = vpack.c.b16 %v832, %v832
  %v836 = vsel %vm211, %v833, 0
  %v839 = vsel %vm211, %v834, 0
  %v842 = vsel %vm218, %v823, 0
  %844 = vmatprep.subr.bf16.mxu0 0
  %845 = vmatpush1.bf16.msra.mxu0 %v822
  %846 = vmatprep.subr.bf16.mxu0 0
  %847 = vmatpush1.bf16.msra.mxu0 %v842
  %848 = vmatprep.subr.bf16.mxu0 0
  %849 = vmatpush1.bf16.msra.mxu0 0
  %850 = vmatprep.subr.bf16.mxu0 0
  %851 = vmatpush1.bf16.msra.mxu0 0
  %852 = vmatprep.subr.bf16.mxu0 0
  %853 = vmatpush1.bf16.msra.mxu0 0
  %854 = vmatprep.subr.bf16.mxu0 0
  %855 = vmatpush1.bf16.msra.mxu0 0
  %856 = vmatprep.subr.bf16.mxu0 0
  %857 = vmatpush1.bf16.msra.mxu0 0
  %858 = vmatprep.subr.bf16.mxu0 0
  %859 = vmatpush1.bf16.msra.mxu0 0
  %860 = vmatprep.subr.bf16.mxu0 0
  %861 = vmatpush1.bf16.msra.mxu0 0
  %862 = vmatprep.subr.bf16.mxu0 0
  %863 = vmatpush1.bf16.msra.mxu0 0
  %864 = vmatprep.subr.bf16.mxu0 0
  %865 = vmatpush1.bf16.msra.mxu0 0
  %866 = vmatprep.subr.bf16.mxu0 0
  %867 = vmatpush1.bf16.msra.mxu0 0
  %868 = vmatprep.subr.bf16.mxu0 0
  %869 = vmatpush1.bf16.msra.mxu0 0
  %870 = vmatprep.subr.bf16.mxu0 0
  %871 = vmatpush1.bf16.msra.mxu0 0
  %872 = vmatprep.subr.bf16.mxu0 0
  %873 = vmatpush1.bf16.msra.mxu0 0
  %874 = vmatprep.subr.bf16.mxu0 0
  %875 = vmatpush1.bf16.msra.mxu0 0
  %876 = vmatprep.mubr.bf16.mxu0 0
  %877 = vmatmul.mubr.bf16.gmra.mrb[0].mxu0 %v836
  %v878 = vpop.f32.mrb[0].mxu0
  %v879 = vadd.f32 0.0, %v878
  %v880 = vpop.f32.mrb[0].mxu0
  %v881 = vpop.f32.mrb[0].mxu0
  %v882 = vadd.f32 0.0, %v881
  %v883 = vpop.f32.mrb[0].mxu0
  %884 = vmatprep.mubr.bf16.mxu0 0
  %885 = vmatmul.mubr.bf16.gmra.mrb[0].mxu0 %v839
  %v886 = vpop.f32.mrb[0].mxu0
  %v887 = vadd.f32 0.0, %v886
  %v888 = vpop.f32.mrb[0].mxu0
  %v889 = vpop.f32.mrb[0].mxu0
  %v890 = vpop.f32.mrb[0].mxu0
  %891 = vdwg.mxu0
  %vm894 = vcmask 1043456
  %v895 = vrot.slane %v823, 4
  %v896 = vrot.slane %v824, 4
  %v897 = vsel %vm894, %v895, %v896
  %v900 = vsel %vm218, %v896, 0
  %902 = vmatprep.subr.bf16.mxu0 0
  %903 = vmatpush1.bf16.msra.mxu0 %v897
  %904 = vmatprep.subr.bf16.mxu0 0
  %905 = vmatpush1.bf16.msra.mxu0 %v900
  %906 = vmatprep.subr.bf16.mxu0 0
  %907 = vmatpush1.bf16.msra.mxu0 0
  %908 = vmatprep.subr.bf16.mxu0 0
  %909 = vmatpush1.bf16.msra.mxu0 0
  %910 = vmatprep.subr.bf16.mxu0 0
  %911 = vmatpush1.bf16.msra.mxu0 0
  %912 = vmatprep.subr.bf16.mxu0 0
  %913 = vmatpush1.bf16.msra.mxu0 0
  %914 = vmatprep.subr.bf16.mxu0 0
  %915 = vmatpush1.bf16.msra.mxu0 0
  %916 = vmatprep.subr.bf16.mxu0 0
  %917 = vmatpush1.bf16.msra.mxu0 0
  %918 = vmatprep.subr.bf16.mxu0 0
  %919 = vmatpush1.bf16.msra.mxu0 0
  %920 = vmatprep.subr.bf16.mxu0 0
  %921 = vmatpush1.bf16.msra.mxu0 0
  %922 = vmatprep.subr.bf16.mxu0 0
  %923 = vmatpush1.bf16.msra.mxu0 0
  %924 = vmatprep.subr.bf16.mxu0 0
  %925 = vmatpush1.bf16.msra.mxu0 0
  %926 = vmatprep.subr.bf16.mxu0 0
  %927 = vmatpush1.bf16.msra.mxu0 0
  %928 = vmatprep.subr.bf16.mxu0 0
  %929 = vmatpush1.bf16.msra.mxu0 0
  %930 = vmatprep.subr.bf16.mxu0 0
  %931 = vmatpush1.bf16.msra.mxu0 0
  %932 = vmatprep.subr.bf16.mxu0 0
  %933 = vmatpush1.bf16.msra.mxu0 0
  %934 = vmatprep.mubr.bf16.mxu0 0
  %935 = vmatmul.mubr.bf16.gmra.mrb[0].mxu0 %v836
  %v936 = vpop.f32.mrb[0].mxu0
  %v937 = vadd.f32 0.0, %v936
  %v938 = vpop.f32.mrb[0].mxu0
  %v939 = vpop.f32.mrb[0].mxu0
  %v940 = vadd.f32 0.0, %v939
  %v941 = vpop.f32.mrb[0].mxu0
  %942 = vmatprep.mubr.bf16.mxu0 0
  %943 = vmatmul.mubr.bf16.gmra.mrb[0].mxu0 %v839
  %v944 = vpop.f32.mrb[0].mxu0
  %v945 = vadd.f32 0.0, %v944
  %v946 = vpop.f32.mrb[0].mxu0
  %v947 = vpop.f32.mrb[0].mxu0
  %v948 = vpop.f32.mrb[0].mxu0
  %949 = vdwg.mxu0
  %v951 = vsel %vm218, %v826, 0
  %953 = vmatprep.subr.bf16.mxu0 0
  %954 = vmatpush1.bf16.msra.mxu0 %v825
  %955 = vmatprep.subr.bf16.mxu0 0
  %956 = vmatpush1.bf16.msra.mxu0 %v951
  %957 = vmatprep.subr.bf16.mxu0 0
  %958 = vmatpush1.bf16.msra.mxu0 0
  %959 = vmatprep.subr.bf16.mxu0 0
  %960 = vmatpush1.bf16.msra.mxu0 0
  %961 = vmatprep.subr.bf16.mxu0 0
  %962 = vmatpush1.bf16.msra.mxu0 0
  %963 = vmatprep.subr.bf16.mxu0 0
  %964 = vmatpush1.bf16.msra.mxu0 0
  %965 = vmatprep.subr.bf16.mxu0 0
  %966 = vmatpush1.bf16.msra.mxu0 0
  %967 = vmatprep.subr.bf16.mxu0 0
  %968 = vmatpush1.bf16.msra.mxu0 0
  %969 = vmatprep.subr.bf16.mxu0 0
  %970 = vmatpush1.bf16.msra.mxu0 0
  %971 = vmatprep.subr.bf16.mxu0 0
  %972 = vmatpush1.bf16.msra.mxu0 0
  %973 = vmatprep.subr.bf16.mxu0 0
  %974 = vmatpush1.bf16.msra.mxu0 0
  %975 = vmatprep.subr.bf16.mxu0 0
  %976 = vmatpush1.bf16.msra.mxu0 0
  %977 = vmatprep.subr.bf16.mxu0 0
  %978 = vmatpush1.bf16.msra.mxu0 0
  %979 = vmatprep.subr.bf16.mxu0 0
  %980 = vmatpush1.bf16.msra.mxu0 0
  %981 = vmatprep.subr.bf16.mxu0 0
  %982 = vmatpush1.bf16.msra.mxu0 0
  %983 = vmatprep.subr.bf16.mxu0 0
  %984 = vmatpush1.bf16.msra.mxu0 0
  %985 = vmatprep.mubr.bf16.mxu0 0
  %986 = vmatmul.mubr.bf16.gmra.mrb[0].mxu0 %v836
  %v987 = vpop.f32.mrb[0].mxu0
  %v988 = vadd.f32 0.0, %v987
  %v989 = vpop.f32.mrb[0].mxu0
  %v990 = vpop.f32.mrb[0].mxu0
  %v991 = vadd.f32 0.0, %v990
  %v992 = vpop.f32.mrb[0].mxu0
  %993 = vmatprep.mubr.bf16.mxu0 0
  %994 = vmatmul.mubr.bf16.gmra.mrb[0].mxu0 %v839
  %v995 = vpop.f32.mrb[0].mxu0
  %v996 = vadd.f32 0.0, %v995
  %v997 = vpop.f32.mrb[0].mxu0
  %v998 = vpop.f32.mrb[0].mxu0
  %v999 = vpop.f32.mrb[0].mxu0
  %1000 = vdwg.mxu0
  %v1001 = vadd.f32 %v106, %v879
  %v1002 = vadd.f32 %v109, %v882
  %v1003 = vadd.f32 %v114, %v887
  %v1004 = vadd.f32 %v681, %v937
  %v1005 = vadd.f32 %v684, %v940
  %v1006 = vadd.f32 %v689, %v945
  %v1007 = vadd.f32 %v712, %v988
  %v1008 = vadd.f32 %v713, %v991
  %v1009 = vadd.f32 %v714, %v996
  %v1010 = vld [vmem:[%s9] sm:$0x1]
  %v1012 = vlaneseq
  %v1013 = vshrl.u32 %v1012, 7
  %v1014 = vsub.s32 0, %v1013
  %v1015 = vrot.slane %v1010, %v1014
  %v1017 = vadd.f32 %v1001, %v1015
  %v1018 = vadd.f32 %v1002, %v1015
  %v1019 = vadd.f32 %v1003, %v1015
  %v1020 = vadd.f32 %v1004, %v1015
  %v1021 = vadd.f32 %v1005, %v1015
  %v1022 = vadd.f32 %v1006, %v1015
  %v1023 = vadd.f32 %v1007, %v1015
  %v1024 = vadd.f32 %v1008, %v1015
  %v1025 = vadd.f32 %v1009, %v1015
  %v1026 = vpack.c.bf16 %v1018, %v1017
  %v1027 = vpack.c.bf16 %v1020, %v1019
  %v1028 = vpack.c.bf16 %v1022, %v1021
  %v1029 = vpack.c.bf16 %v1024, %v1023
  %v1030 = vpack.c.bf16 %v1025, %v1025
  %s1031 = scalar_lea.vmem %s8, 16
  %v1032 = vld [vmem:[%s1031] sm:$0xf]
  %v1033 = vld [vmem:[%s1031 + $0x4] sm:$0xf]
  %v1034 = vld [vmem:[%s1031 + $0x8] sm:$0xf]
  %v1035 = vld [vmem:[%s1031 + $0xc] sm:$0xf]
  %v1040 = vunpack.c.l.b16 %v1032
  %v1041 = vunpack.c.l.b16 %v1033
  %v1042 = vunpack.c.l.b16 %v1034
  %v1043 = vunpack.c.l.b16 %v1035
  %v1044 = vpack.c.b16 %v1041, %v1040
  %v1045 = vpack.c.b16 %v1043, %v1042
  %v1049 = vsel %vm64, %v1026, 0
  %v1052 = vsel %vm64, %v1027, 0
  %v1055 = vsel %vm64, %v1028, 0
  %v1058 = vsel %vm64, %v1029, 0
  %v1061 = vsel %vm64, %v1030, 0
  %1063 = vmatprep.subr.bf16.mxu0 0
  %1064 = vmatpush1.bf16.msra.mxu0 %v1044
  %1065 = vmatprep.subr.bf16.mxu0 0
  %1066 = vmatpush1.bf16.msra.mxu0 %v1045
  %1067 = vmatprep.subr.bf16.mxu0 0
  %1068 = vmatpush1.bf16.msra.mxu0 0
  %1069 = vmatprep.subr.bf16.mxu0 0
  %1070 = vmatpush1.bf16.msra.mxu0 0
  %1071 = vmatprep.subr.bf16.mxu0 0
  %1072 = vmatpush1.bf16.msra.mxu0 0
  %1073 = vmatprep.subr.bf16.mxu0 0
  %1074 = vmatpush1.bf16.msra.mxu0 0
  %1075 = vmatprep.subr.bf16.mxu0 0
  %1076 = vmatpush1.bf16.msra.mxu0 0
  %1077 = vmatprep.subr.bf16.mxu0 0
  %1078 = vmatpush1.bf16.msra.mxu0 0
  %1079 = vmatprep.subr.bf16.mxu0 0
  %1080 = vmatpush1.bf16.msra.mxu0 0
  %1081 = vmatprep.subr.bf16.mxu0 0
  %1082 = vmatpush1.bf16.msra.mxu0 0
  %1083 = vmatprep.subr.bf16.mxu0 0
  %1084 = vmatpush1.bf16.msra.mxu0 0
  %1085 = vmatprep.subr.bf16.mxu0 0
  %1086 = vmatpush1.bf16.msra.mxu0 0
  %1087 = vmatprep.subr.bf16.mxu0 0
  %1088 = vmatpush1.bf16.msra.mxu0 0
  %1089 = vmatprep.subr.bf16.mxu0 0
  %1090 = vmatpush1.bf16.msra.mxu0 0
  %1091 = vmatprep.subr.bf16.mxu0 0
  %1092 = vmatpush1.bf16.msra.mxu0 0
  %1093 = vmatprep.subr.bf16.mxu0 0
  %1094 = vmatpush1.bf16.msra.mxu0 0
  %1095 = vmatprep.mubr.bf16.mxu0 0
  %1096 = vmatmul.mubr.bf16.gmra.mrb[0].mxu0 %v1049
  %v1097 = vpop.f32.mrb[0].mxu0
  %v1098 = vadd.f32 0.0, %v1097
  %v1099 = vpop.f32.mrb[0].mxu0
  %v1100 = vpop.f32.mrb[0].mxu0
  %v1101 = vadd.f32 0.0, %v1100
  %v1102 = vpop.f32.mrb[0].mxu0
  %1103 = vmatprep.mubr.bf16.mxu0 0
  %1104 = vmatmul.mubr.bf16.gmra.mrb[0].mxu0 %v1052
  %v1105 = vpop.f32.mrb[0].mxu0
  %v1106 = vadd.f32 0.0, %v1105
  %v1107 = vpop.f32.mrb[0].mxu0
  %v1108 = vpop.f32.mrb[0].mxu0
  %v1109 = vadd.f32 0.0, %v1108
  %v1110 = vpop.f32.mrb[0].mxu0
  %1111 = vmatprep.mubr.bf16.mxu0 0
  %1112 = vmatmul.mubr.bf16.gmra.mrb[0].mxu0 %v1055
  %v1113 = vpop.f32.mrb[0].mxu0
  %v1114 = vadd.f32 0.0, %v1113
  %v1115 = vpop.f32.mrb[0].mxu0
  %v1116 = vpop.f32.mrb[0].mxu0
  %v1117 = vadd.f32 0.0, %v1116
  %v1118 = vpop.f32.mrb[0].mxu0
  %1119 = vmatprep.mubr.bf16.mxu0 0
  %1120 = vmatmul.mubr.bf16.gmra.mrb[0].mxu0 %v1058
  %v1121 = vpop.f32.mrb[0].mxu0
  %v1122 = vadd.f32 0.0, %v1121
  %v1123 = vpop.f32.mrb[0].mxu0
  %v1124 = vpop.f32.mrb[0].mxu0
  %v1125 = vadd.f32 0.0, %v1124
  %v1126 = vpop.f32.mrb[0].mxu0
  %1127 = vmatprep.mubr.bf16.mxu0 0
  %1128 = vmatmul.mubr.bf16.gmra.mrb[0].mxu0 %v1061
  %v1129 = vpop.f32.mrb[0].mxu0
  %v1130 = vadd.f32 0.0, %v1129
  %v1131 = vpop.f32.mrb[0].mxu0
  %v1132 = vpop.f32.mrb[0].mxu0
  %v1133 = vpop.f32.mrb[0].mxu0
  %1134 = vdwg.mxu0
  %v1135 = vpack.c.bf16 %v1101, %v1098
  %v1136 = vpack.c.bf16 %v1109, %v1106
  %v1137 = vpack.c.bf16 %v1117, %v1114
  %v1138 = vpack.c.bf16 %v1125, %v1122
  %v1139 = vpack.c.bf16 %v1130, %v1130
  %v1141 = vsel %vm218, %v1136, 0
  %1143 = vmatprep.subr.bf16.mxu0 0
  %1144 = vmatpush1.bf16.msra.mxu0 %v1135
  %1145 = vmatprep.subr.bf16.mxu0 0
  %1146 = vmatpush1.bf16.msra.mxu0 %v1141
  %1147 = vmatprep.subr.bf16.mxu0 0
  %1148 = vmatpush1.bf16.msra.mxu0 0
  %1149 = vmatprep.subr.bf16.mxu0 0
  %1150 = vmatpush1.bf16.msra.mxu0 0
  %1151 = vmatprep.subr.bf16.mxu0 0
  %1152 = vmatpush1.bf16.msra.mxu0 0
  %1153 = vmatprep.subr.bf16.mxu0 0
  %1154 = vmatpush1.bf16.msra.mxu0 0
  %1155 = vmatprep.subr.bf16.mxu0 0
  %1156 = vmatpush1.bf16.msra.mxu0 0
  %1157 = vmatprep.subr.bf16.mxu0 0
  %1158 = vmatpush1.bf16.msra.mxu0 0
  %1159 = vmatprep.subr.bf16.mxu0 0
  %1160 = vmatpush1.bf16.msra.mxu0 0
  %1161 = vmatprep.subr.bf16.mxu0 0
  %1162 = vmatpush1.bf16.msra.mxu0 0
  %1163 = vmatprep.subr.bf16.mxu0 0
  %1164 = vmatpush1.bf16.msra.mxu0 0
  %1165 = vmatprep.subr.bf16.mxu0 0
  %1166 = vmatpush1.bf16.msra.mxu0 0
  %1167 = vmatprep.subr.bf16.mxu0 0
  %1168 = vmatpush1.bf16.msra.mxu0 0
  %1169 = vmatprep.subr.bf16.mxu0 0
  %1170 = vmatpush1.bf16.msra.mxu0 0
  %1171 = vmatprep.subr.bf16.mxu0 0
  %1172 = vmatpush1.bf16.msra.mxu0 0
  %1173 = vmatprep.subr.bf16.mxu0 0
  %1174 = vmatpush1.bf16.msra.mxu0 0
  %1175 = vmatprep.mubr.bf16.mxu0 0
  %1176 = vmatmul.mubr.bf16.gmra.mrb[0].mxu0 %v836
  %v1177 = vpop.f32.mrb[0].mxu0
  %v1178 = vadd.f32 0.0, %v1177
  %v1179 = vpop.f32.mrb[0].mxu0
  %v1180 = vpop.f32.mrb[0].mxu0
  %v1181 = vadd.f32 0.0, %v1180
  %v1182 = vpop.f32.mrb[0].mxu0
  %1183 = vmatprep.mubr.bf16.mxu0 0
  %1184 = vmatmul.mubr.bf16.gmra.mrb[0].mxu0 %v839
  %v1185 = vpop.f32.mrb[0].mxu0
  %v1186 = vadd.f32 0.0, %v1185
  %v1187 = vpop.f32.mrb[0].mxu0
  %v1188 = vpop.f32.mrb[0].mxu0
  %v1189 = vpop.f32.mrb[0].mxu0
  %1190 = vdwg.mxu0
  %v1193 = vrot.slane %v1136, 4
  %v1194 = vrot.slane %v1137, 4
  %v1195 = vsel %vm894, %v1193, %v1194
  %v1198 = vsel %vm218, %v1194, 0
  %1200 = vmatprep.subr.bf16.mxu0 0
  %1201 = vmatpush1.bf16.msra.mxu0 %v1195
  %1202 = vmatprep.subr.bf16.mxu0 0
  %1203 = vmatpush1.bf16.msra.mxu0 %v1198
  %1204 = vmatprep.subr.bf16.mxu0 0
  %1205 = vmatpush1.bf16.msra.mxu0 0
  %1206 = vmatprep.subr.bf16.mxu0 0
  %1207 = vmatpush1.bf16.msra.mxu0 0
  %1208 = vmatprep.subr.bf16.mxu0 0
  %1209 = vmatpush1.bf16.msra.mxu0 0
  %1210 = vmatprep.subr.bf16.mxu0 0
  %1211 = vmatpush1.bf16.msra.mxu0 0
  %1212 = vmatprep.subr.bf16.mxu0 0
  %1213 = vmatpush1.bf16.msra.mxu0 0
  %1214 = vmatprep.subr.bf16.mxu0 0
  %1215 = vmatpush1.bf16.msra.mxu0 0
  %1216 = vmatprep.subr.bf16.mxu0 0
  %1217 = vmatpush1.bf16.msra.mxu0 0
  %1218 = vmatprep.subr.bf16.mxu0 0
  %1219 = vmatpush1.bf16.msra.mxu0 0
  %1220 = vmatprep.subr.bf16.mxu0 0
  %1221 = vmatpush1.bf16.msra.mxu0 0
  %1222 = vmatprep.subr.bf16.mxu0 0
  %1223 = vmatpush1.bf16.msra.mxu0 0
  %1224 = vmatprep.subr.bf16.mxu0 0
  %1225 = vmatpush1.bf16.msra.mxu0 0
  %1226 = vmatprep.subr.bf16.mxu0 0
  %1227 = vmatpush1.bf16.msra.mxu0 0
  %1228 = vmatprep.subr.bf16.mxu0 0
  %1229 = vmatpush1.bf16.msra.mxu0 0
  %1230 = vmatprep.subr.bf16.mxu0 0
  %1231 = vmatpush1.bf16.msra.mxu0 0
  %1232 = vmatprep.mubr.bf16.mxu0 0
  %1233 = vmatmul.mubr.bf16.gmra.mrb[0].mxu0 %v836
  %v1234 = vpop.f32.mrb[0].mxu0
  %v1235 = vadd.f32 0.0, %v1234
  %v1236 = vpop.f32.mrb[0].mxu0
  %v1237 = vpop.f32.mrb[0].mxu0
  %v1238 = vadd.f32 0.0, %v1237
  %v1239 = vpop.f32.mrb[0].mxu0
  %1240 = vmatprep.mubr.bf16.mxu0 0
  %1241 = vmatmul.mubr.bf16.gmra.mrb[0].mxu0 %v839
  %v1242 = vpop.f32.mrb[0].mxu0
  %v1243 = vadd.f32 0.0, %v1242
  %v1244 = vpop.f32.mrb[0].mxu0
  %v1245 = vpop.f32.mrb[0].mxu0
  %v1246 = vpop.f32.mrb[0].mxu0
  %1247 = vdwg.mxu0
  %v1249 = vsel %vm218, %v1139, 0
  %1251 = vmatprep.subr.bf16.mxu0 0
  %1252 = vmatpush1.bf16.msra.mxu0 %v1138
  %1253 = vmatprep.subr.bf16.mxu0 0
  %1254 = vmatpush1.bf16.msra.mxu0 %v1249
  %1255 = vmatprep.subr.bf16.mxu0 0
  %1256 = vmatpush1.bf16.msra.mxu0 0
  %1257 = vmatprep.subr.bf16.mxu0 0
  %1258 = vmatpush1.bf16.msra.mxu0 0
  %1259 = vmatprep.subr.bf16.mxu0 0
  %1260 = vmatpush1.bf16.msra.mxu0 0
  %1261 = vmatprep.subr.bf16.mxu0 0
  %1262 = vmatpush1.bf16.msra.mxu0 0
  %1263 = vmatprep.subr.bf16.mxu0 0
  %1264 = vmatpush1.bf16.msra.mxu0 0
  %1265 = vmatprep.subr.bf16.mxu0 0
  %1266 = vmatpush1.bf16.msra.mxu0 0
  %1267 = vmatprep.subr.bf16.mxu0 0
  %1268 = vmatpush1.bf16.msra.mxu0 0
  %1269 = vmatprep.subr.bf16.mxu0 0
  %1270 = vmatpush1.bf16.msra.mxu0 0
  %1271 = vmatprep.subr.bf16.mxu0 0
  %1272 = vmatpush1.bf16.msra.mxu0 0
  %1273 = vmatprep.subr.bf16.mxu0 0
  %1274 = vmatpush1.bf16.msra.mxu0 0
  %1275 = vmatprep.subr.bf16.mxu0 0
  %1276 = vmatpush1.bf16.msra.mxu0 0
  %1277 = vmatprep.subr.bf16.mxu0 0
  %1278 = vmatpush1.bf16.msra.mxu0 0
  %1279 = vmatprep.subr.bf16.mxu0 0
  %1280 = vmatpush1.bf16.msra.mxu0 0
  %1281 = vmatprep.subr.bf16.mxu0 0
  %1282 = vmatpush1.bf16.msra.mxu0 0
  %1283 = vmatprep.mubr.bf16.mxu0 0
  %1284 = vmatmul.mubr.bf16.gmra.mrb[0].mxu0 %v836
  %v1285 = vpop.f32.mrb[0].mxu0
  %v1286 = vadd.f32 0.0, %v1285
  %v1287 = vpop.f32.mrb[0].mxu0
  %v1288 = vpop.f32.mrb[0].mxu0
  %v1289 = vadd.f32 0.0, %v1288
  %v1290 = vpop.f32.mrb[0].mxu0
  %1291 = vmatprep.mubr.bf16.mxu0 0
  %1292 = vmatmul.mubr.bf16.gmra.mrb[0].mxu0 %v839
  %v1293 = vpop.f32.mrb[0].mxu0
  %v1294 = vadd.f32 0.0, %v1293
  %v1295 = vpop.f32.mrb[0].mxu0
  %v1296 = vpop.f32.mrb[0].mxu0
  %v1297 = vpop.f32.mrb[0].mxu0
  %1298 = vdwg.mxu0
  %v1299 = vadd.f32 %v1017, %v1178
  %v1300 = vadd.f32 %v1018, %v1181
  %v1301 = vadd.f32 %v1019, %v1186
  %v1302 = vadd.f32 %v1020, %v1235
  %v1303 = vadd.f32 %v1021, %v1238
  %v1304 = vadd.f32 %v1022, %v1243
  %v1305 = vadd.f32 %v1023, %v1286
  %v1306 = vadd.f32 %v1024, %v1289
  %v1307 = vadd.f32 %v1025, %v1294
  %s1308 = scalar_lea.vmem %s9, 1
  %v1309 = vld [vmem:[%s1308] sm:$0x1]
  %v1311 = vlaneseq
  %v1312 = vshrl.u32 %v1311, 7
  %v1313 = vsub.s32 0, %v1312
  %v1314 = vrot.slane %v1309, %v1313
  %v1316 = vadd.f32 %v1299, %v1314
  %v1317 = vadd.f32 %v1300, %v1314
  %v1318 = vadd.f32 %v1301, %v1314
  %v1319 = vadd.f32 %v1302, %v1314
  %v1320 = vadd.f32 %v1303, %v1314
  %v1321 = vadd.f32 %v1304, %v1314
  %v1322 = vadd.f32 %v1305, %v1314
  %v1323 = vadd.f32 %v1306, %v1314
  %v1324 = vadd.f32 %v1307, %v1314
  %v1325 = vpack.c.bf16 %v1317, %v1316
  %v1326 = vpack.c.bf16 %v1319, %v1318
  %v1327 = vpack.c.bf16 %v1321, %v1320
  %v1328 = vpack.c.bf16 %v1323, %v1322
  %v1329 = vpack.c.bf16 %v1324, %v1324
  %s1330 = scalar_lea.vmem %s8, 32
  %v1331 = vld [vmem:[%s1330] sm:$0xf]
  %v1332 = vld [vmem:[%s1330 + $0x4] sm:$0xf]
  %v1333 = vld [vmem:[%s1330 + $0x8] sm:$0xf]
  %v1334 = vld [vmem:[%s1330 + $0xc] sm:$0xf]
  %v1339 = vunpack.c.l.b16 %v1331
  %v1340 = vunpack.c.l.b16 %v1332
  %v1341 = vunpack.c.l.b16 %v1333
  %v1342 = vunpack.c.l.b16 %v1334
  %v1343 = vpack.c.b16 %v1340, %v1339
  %v1344 = vpack.c.b16 %v1342, %v1341
  %v1348 = vsel %vm64, %v1325, 0
  %v1351 = vsel %vm64, %v1326, 0
  %v1354 = vsel %vm64, %v1327, 0
  %v1357 = vsel %vm64, %v1328, 0
  %v1360 = vsel %vm64, %v1329, 0
  %1362 = vmatprep.subr.bf16.mxu0 0
  %1363 = vmatpush1.bf16.msra.mxu0 %v1343
  %1364 = vmatprep.subr.bf16.mxu0 0
  %1365 = vmatpush1.bf16.msra.mxu0 %v1344
  %1366 = vmatprep.subr.bf16.mxu0 0
  %1367 = vmatpush1.bf16.msra.mxu0 0
  %1368 = vmatprep.subr.bf16.mxu0 0
  %1369 = vmatpush1.bf16.msra.mxu0 0
  %1370 = vmatprep.subr.bf16.mxu0 0
  %1371 = vmatpush1.bf16.msra.mxu0 0
  %1372 = vmatprep.subr.bf16.mxu0 0
  %1373 = vmatpush1.bf16.msra.mxu0 0
  %1374 = vmatprep.subr.bf16.mxu0 0
  %1375 = vmatpush1.bf16.msra.mxu0 0
  %1376 = vmatprep.subr.bf16.mxu0 0
  %1377 = vmatpush1.bf16.msra.mxu0 0
  %1378 = vmatprep.subr.bf16.mxu0 0
  %1379 = vmatpush1.bf16.msra.mxu0 0
  %1380 = vmatprep.subr.bf16.mxu0 0
  %1381 = vmatpush1.bf16.msra.mxu0 0
  %1382 = vmatprep.subr.bf16.mxu0 0
  %1383 = vmatpush1.bf16.msra.mxu0 0
  %1384 = vmatprep.subr.bf16.mxu0 0
  %1385 = vmatpush1.bf16.msra.mxu0 0
  %1386 = vmatprep.subr.bf16.mxu0 0
  %1387 = vmatpush1.bf16.msra.mxu0 0
  %1388 = vmatprep.subr.bf16.mxu0 0
  %1389 = vmatpush1.bf16.msra.mxu0 0
  %1390 = vmatprep.subr.bf16.mxu0 0
  %1391 = vmatpush1.bf16.msra.mxu0 0
  %1392 = vmatprep.subr.bf16.mxu0 0
  %1393 = vmatpush1.bf16.msra.mxu0 0
  %1394 = vmatprep.mubr.bf16.mxu0 0
  %1395 = vmatmul.mubr.bf16.gmra.mrb[0].mxu0 %v1348
  %v1396 = vpop.f32.mrb[0].mxu0
  %v1397 = vadd.f32 0.0, %v1396
  %v1398 = vpop.f32.mrb[0].mxu0
  %v1399 = vpop.f32.mrb[0].mxu0
  %v1400 = vadd.f32 0.0, %v1399
  %v1401 = vpop.f32.mrb[0].mxu0
  %1402 = vmatprep.mubr.bf16.mxu0 0
  %1403 = vmatmul.mubr.bf16.gmra.mrb[0].mxu0 %v1351
  %v1404 = vpop.f32.mrb[0].mxu0
  %v1405 = vadd.f32 0.0, %v1404
  %v1406 = vpop.f32.mrb[0].mxu0
  %v1407 = vpop.f32.mrb[0].mxu0
  %v1408 = vadd.f32 0.0, %v1407
  %v1409 = vpop.f32.mrb[0].mxu0
  %1410 = vmatprep.mubr.bf16.mxu0 0
  %1411 = vmatmul.mubr.bf16.gmra.mrb[0].mxu0 %v1354
  %v1412 = vpop.f32.mrb[0].mxu0
  %v1413 = vadd.f32 0.0, %v1412
  %v1414 = vpop.f32.mrb[0].mxu0
  %v1415 = vpop.f32.mrb[0].mxu0
  %v1416 = vadd.f32 0.0, %v1415
  %v1417 = vpop.f32.mrb[0].mxu0
  %1418 = vmatprep.mubr.bf16.mxu0 0
  %1419 = vmatmul.mubr.bf16.gmra.mrb[0].mxu0 %v1357
  %v1420 = vpop.f32.mrb[0].mxu0
  %v1421 = vadd.f32 0.0, %v1420
  %v1422 = vpop.f32.mrb[0].mxu0
  %v1423 = vpop.f32.mrb[0].mxu0
  %v1424 = vadd.f32 0.0, %v1423
  %v1425 = vpop.f32.mrb[0].mxu0
  %1426 = vmatprep.mubr.bf16.mxu0 0
  %1427 = vmatmul.mubr.bf16.gmra.mrb[0].mxu0 %v1360
  %v1428 = vpop.f32.mrb[0].mxu0
  %v1429 = vadd.f32 0.0, %v1428
  %v1430 = vpop.f32.mrb[0].mxu0
  %v1431 = vpop.f32.mrb[0].mxu0
  %v1432 = vpop.f32.mrb[0].mxu0
  %1433 = vdwg.mxu0
  %v1434 = vpack.c.bf16 %v1400, %v1397
  %v1435 = vpack.c.bf16 %v1408, %v1405
  %v1436 = vpack.c.bf16 %v1416, %v1413
  %v1437 = vpack.c.bf16 %v1424, %v1421
  %v1438 = vpack.c.bf16 %v1429, %v1429
  %v1440 = vsel %vm218, %v1435, 0
  %1442 = vmatprep.subr.bf16.mxu0 0
  %1443 = vmatpush1.bf16.msra.mxu0 %v1434
  %1444 = vmatprep.subr.bf16.mxu0 0
  %1445 = vmatpush1.bf16.msra.mxu0 %v1440
  %1446 = vmatprep.subr.bf16.mxu0 0
  %1447 = vmatpush1.bf16.msra.mxu0 0
  %1448 = vmatprep.subr.bf16.mxu0 0
  %1449 = vmatpush1.bf16.msra.mxu0 0
  %1450 = vmatprep.subr.bf16.mxu0 0
  %1451 = vmatpush1.bf16.msra.mxu0 0
  %1452 = vmatprep.subr.bf16.mxu0 0
  %1453 = vmatpush1.bf16.msra.mxu0 0
  %1454 = vmatprep.subr.bf16.mxu0 0
  %1455 = vmatpush1.bf16.msra.mxu0 0
  %1456 = vmatprep.subr.bf16.mxu0 0
  %1457 = vmatpush1.bf16.msra.mxu0 0
  %1458 = vmatprep.subr.bf16.mxu0 0
  %1459 = vmatpush1.bf16.msra.mxu0 0
  %1460 = vmatprep.subr.bf16.mxu0 0
  %1461 = vmatpush1.bf16.msra.mxu0 0
  %1462 = vmatprep.subr.bf16.mxu0 0
  %1463 = vmatpush1.bf16.msra.mxu0 0
  %1464 = vmatprep.subr.bf16.mxu0 0
  %1465 = vmatpush1.bf16.msra.mxu0 0
  %1466 = vmatprep.subr.bf16.mxu0 0
  %1467 = vmatpush1.bf16.msra.mxu0 0
  %1468 = vmatprep.subr.bf16.mxu0 0
  %1469 = vmatpush1.bf16.msra.mxu0 0
  %1470 = vmatprep.subr.bf16.mxu0 0
  %1471 = vmatpush1.bf16.msra.mxu0 0
  %1472 = vmatprep.subr.bf16.mxu0 0
  %1473 = vmatpush1.bf16.msra.mxu0 0
  %1474 = vmatprep.mubr.bf16.mxu0 0
  %1475 = vmatmul.mubr.bf16.gmra.mrb[0].mxu0 %v836
  %v1476 = vpop.f32.mrb[0].mxu0
  %v1477 = vadd.f32 0.0, %v1476
  %v1478 = vpop.f32.mrb[0].mxu0
  %v1479 = vpop.f32.mrb[0].mxu0
  %v1480 = vadd.f32 0.0, %v1479
  %v1481 = vpop.f32.mrb[0].mxu0
  %1482 = vmatprep.mubr.bf16.mxu0 0
  %1483 = vmatmul.mubr.bf16.gmra.mrb[0].mxu0 %v839
  %v1484 = vpop.f32.mrb[0].mxu0
  %v1485 = vadd.f32 0.0, %v1484
  %v1486 = vpop.f32.mrb[0].mxu0
  %v1487 = vpop.f32.mrb[0].mxu0
  %v1488 = vpop.f32.mrb[0].mxu0
  %1489 = vdwg.mxu0
  %v1492 = vrot.slane %v1435, 4
  %v1493 = vrot.slane %v1436, 4
  %v1494 = vsel %vm894, %v1492, %v1493
  %v1497 = vsel %vm218, %v1493, 0
  %1499 = vmatprep.subr.bf16.mxu0 0
  %1500 = vmatpush1.bf16.msra.mxu0 %v1494
  %1501 = vmatprep.subr.bf16.mxu0 0
  %1502 = vmatpush1.bf16.msra.mxu0 %v1497
  %1503 = vmatprep.subr.bf16.mxu0 0
  %1504 = vmatpush1.bf16.msra.mxu0 0
  %1505 = vmatprep.subr.bf16.mxu0 0
  %1506 = vmatpush1.bf16.msra.mxu0 0
  %1507 = vmatprep.subr.bf16.mxu0 0
  %1508 = vmatpush1.bf16.msra.mxu0 0
  %1509 = vmatprep.subr.bf16.mxu0 0
  %1510 = vmatpush1.bf16.msra.mxu0 0
  %1511 = vmatprep.subr.bf16.mxu0 0
  %1512 = vmatpush1.bf16.msra.mxu0 0
  %1513 = vmatprep.subr.bf16.mxu0 0
  %1514 = vmatpush1.bf16.msra.mxu0 0
  %1515 = vmatprep.subr.bf16.mxu0 0
  %1516 = vmatpush1.bf16.msra.mxu0 0
  %1517 = vmatprep.subr.bf16.mxu0 0
  %1518 = vmatpush1.bf16.msra.mxu0 0
  %1519 = vmatprep.subr.bf16.mxu0 0
  %1520 = vmatpush1.bf16.msra.mxu0 0
  %1521 = vmatprep.subr.bf16.mxu0 0
  %1522 = vmatpush1.bf16.msra.mxu0 0
  %1523 = vmatprep.subr.bf16.mxu0 0
  %1524 = vmatpush1.bf16.msra.mxu0 0
  %1525 = vmatprep.subr.bf16.mxu0 0
  %1526 = vmatpush1.bf16.msra.mxu0 0
  %1527 = vmatprep.subr.bf16.mxu0 0
  %1528 = vmatpush1.bf16.msra.mxu0 0
  %1529 = vmatprep.subr.bf16.mxu0 0
  %1530 = vmatpush1.bf16.msra.mxu0 0
  %1531 = vmatprep.mubr.bf16.mxu0 0
  %1532 = vmatmul.mubr.bf16.gmra.mrb[0].mxu0 %v836
  %v1533 = vpop.f32.mrb[0].mxu0
  %v1534 = vadd.f32 0.0, %v1533
  %v1535 = vpop.f32.mrb[0].mxu0
  %v1536 = vpop.f32.mrb[0].mxu0
  %v1537 = vadd.f32 0.0, %v1536
  %v1538 = vpop.f32.mrb[0].mxu0
  %1539 = vmatprep.mubr.bf16.mxu0 0
  %1540 = vmatmul.mubr.bf16.gmra.mrb[0].mxu0 %v839
  %v1541 = vpop.f32.mrb[0].mxu0
  %v1542 = vadd.f32 0.0, %v1541
  %v1543 = vpop.f32.mrb[0].mxu0
  %v1544 = vpop.f32.mrb[0].mxu0
  %v1545 = vpop.f32.mrb[0].mxu0
  %1546 = vdwg.mxu0
  %v1548 = vsel %vm218, %v1438, 0
  %1550 = vmatprep.subr.bf16.mxu0 0
  %1551 = vmatpush1.bf16.msra.mxu0 %v1437
  %1552 = vmatprep.subr.bf16.mxu0 0
  %1553 = vmatpush1.bf16.msra.mxu0 %v1548
  %1554 = vmatprep.subr.bf16.mxu0 0
  %1555 = vmatpush1.bf16.msra.mxu0 0
  %1556 = vmatprep.subr.bf16.mxu0 0
  %1557 = vmatpush1.bf16.msra.mxu0 0
  %1558 = vmatprep.subr.bf16.mxu0 0
  %1559 = vmatpush1.bf16.msra.mxu0 0
  %1560 = vmatprep.subr.bf16.mxu0 0
  %1561 = vmatpush1.bf16.msra.mxu0 0
  %1562 = vmatprep.subr.bf16.mxu0 0
  %1563 = vmatpush1.bf16.msra.mxu0 0
  %1564 = vmatprep.subr.bf16.mxu0 0
  %1565 = vmatpush1.bf16.msra.mxu0 0
  %1566 = vmatprep.subr.bf16.mxu0 0
  %1567 = vmatpush1.bf16.msra.mxu0 0
  %1568 = vmatprep.subr.bf16.mxu0 0
  %1569 = vmatpush1.bf16.msra.mxu0 0
  %1570 = vmatprep.subr.bf16.mxu0 0
  %1571 = vmatpush1.bf16.msra.mxu0 0
  %1572 = vmatprep.subr.bf16.mxu0 0
  %1573 = vmatpush1.bf16.msra.mxu0 0
  %1574 = vmatprep.subr.bf16.mxu0 0
  %1575 = vmatpush1.bf16.msra.mxu0 0
  %1576 = vmatprep.subr.bf16.mxu0 0
  %1577 = vmatpush1.bf16.msra.mxu0 0
  %1578 = vmatprep.subr.bf16.mxu0 0
  %1579 = vmatpush1.bf16.msra.mxu0 0
  %1580 = vmatprep.subr.bf16.mxu0 0
  %1581 = vmatpush1.bf16.msra.mxu0 0
  %1582 = vmatprep.mubr.bf16.mxu0 0
  %1583 = vmatmul.mubr.bf16.gmra.mrb[0].mxu0 %v836
  %v1584 = vpop.f32.mrb[0].mxu0
  %v1585 = vadd.f32 0.0, %v1584
  %v1586 = vpop.f32.mrb[0].mxu0
  %v1587 = vpop.f32.mrb[0].mxu0
  %v1588 = vadd.f32 0.0, %v1587
  %v1589 = vpop.f32.mrb[0].mxu0
  %1590 = vmatprep.mubr.bf16.mxu0 0
  %1591 = vmatmul.mubr.bf16.gmra.mrb[0].mxu0 %v839
  %v1592 = vpop.f32.mrb[0].mxu0
  %v1593 = vadd.f32 0.0, %v1592
  %v1594 = vpop.f32.mrb[0].mxu0
  %v1595 = vpop.f32.mrb[0].mxu0
  %v1596 = vpop.f32.mrb[0].mxu0
  %1597 = vdwg.mxu0
  %v1598 = vadd.f32 %v1316, %v1477
  %v1599 = vadd.f32 %v1317, %v1480
  %v1600 = vadd.f32 %v1318, %v1485
  %v1601 = vadd.f32 %v1319, %v1534
  %v1602 = vadd.f32 %v1320, %v1537
  %v1603 = vadd.f32 %v1321, %v1542
  %v1604 = vadd.f32 %v1322, %v1585
  %v1605 = vadd.f32 %v1323, %v1588
  %v1606 = vadd.f32 %v1324, %v1593
  %s1607 = scalar_lea.vmem %s9, 2
  %v1608 = vld [vmem:[%s1607] sm:$0x1]
  %v1610 = vlaneseq
  %v1611 = vshrl.u32 %v1610, 7
  %v1612 = vsub.s32 0, %v1611
  %v1613 = vrot.slane %v1608, %v1612
  %v1615 = vadd.f32 %v1598, %v1613
  %v1616 = vadd.f32 %v1599, %v1613
  %v1617 = vadd.f32 %v1600, %v1613
  %v1618 = vadd.f32 %v1601, %v1613
  %v1619 = vadd.f32 %v1602, %v1613
  %v1620 = vadd.f32 %v1603, %v1613
  %v1621 = vadd.f32 %v1604, %v1613
  %v1622 = vadd.f32 %v1605, %v1613
  %v1623 = vadd.f32 %v1606, %v1613
  %v1624 = vpack.c.bf16 %v1616, %v1615
  %v1625 = vpack.c.bf16 %v1618, %v1617
  %v1626 = vpack.c.bf16 %v1620, %v1619
  %v1627 = vpack.c.bf16 %v1622, %v1621
  %v1628 = vpack.c.bf16 %v1623, %v1623
  %s1629 = scalar_lea.vmem %s8, 48
  %v1630 = vld [vmem:[%s1629] sm:$0xf]
  %v1631 = vld [vmem:[%s1629 + $0x4] sm:$0xf]
  %v1632 = vld [vmem:[%s1629 + $0x8] sm:$0xf]
  %v1633 = vld [vmem:[%s1629 + $0xc] sm:$0xf]
  %v1638 = vunpack.c.l.b16 %v1630
  %v1639 = vunpack.c.l.b16 %v1631
  %v1640 = vunpack.c.l.b16 %v1632
  %v1641 = vunpack.c.l.b16 %v1633
  %v1642 = vpack.c.b16 %v1639, %v1638
  %v1643 = vpack.c.b16 %v1641, %v1640
  %v1647 = vsel %vm64, %v1624, 0
  %v1650 = vsel %vm64, %v1625, 0
  %v1653 = vsel %vm64, %v1626, 0
  %v1656 = vsel %vm64, %v1627, 0
  %v1659 = vsel %vm64, %v1628, 0
  %1661 = vmatprep.subr.bf16.mxu0 0
  %1662 = vmatpush1.bf16.msra.mxu0 %v1642
  %1663 = vmatprep.subr.bf16.mxu0 0
  %1664 = vmatpush1.bf16.msra.mxu0 %v1643
  %1665 = vmatprep.subr.bf16.mxu0 0
  %1666 = vmatpush1.bf16.msra.mxu0 0
  %1667 = vmatprep.subr.bf16.mxu0 0
  %1668 = vmatpush1.bf16.msra.mxu0 0
  %1669 = vmatprep.subr.bf16.mxu0 0
  %1670 = vmatpush1.bf16.msra.mxu0 0
  %1671 = vmatprep.subr.bf16.mxu0 0
  %1672 = vmatpush1.bf16.msra.mxu0 0
  %1673 = vmatprep.subr.bf16.mxu0 0
  %1674 = vmatpush1.bf16.msra.mxu0 0
  %1675 = vmatprep.subr.bf16.mxu0 0
  %1676 = vmatpush1.bf16.msra.mxu0 0
  %1677 = vmatprep.subr.bf16.mxu0 0
  %1678 = vmatpush1.bf16.msra.mxu0 0
  %1679 = vmatprep.subr.bf16.mxu0 0
  %1680 = vmatpush1.bf16.msra.mxu0 0
  %1681 = vmatprep.subr.bf16.mxu0 0
  %1682 = vmatpush1.bf16.msra.mxu0 0
  %1683 = vmatprep.subr.bf16.mxu0 0
  %1684 = vmatpush1.bf16.msra.mxu0 0
  %1685 = vmatprep.subr.bf16.mxu0 0
  %1686 = vmatpush1.bf16.msra.mxu0 0
  %1687 = vmatprep.subr.bf16.mxu0 0
  %1688 = vmatpush1.bf16.msra.mxu0 0
  %1689 = vmatprep.subr.bf16.mxu0 0
  %1690 = vmatpush1.bf16.msra.mxu0 0
  %1691 = vmatprep.subr.bf16.mxu0 0
  %1692 = vmatpush1.bf16.msra.mxu0 0
  %1693 = vmatprep.mubr.bf16.mxu0 0
  %1694 = vmatmul.mubr.bf16.gmra.mrb[0].mxu0 %v1647
  %v1695 = vpop.f32.mrb[0].mxu0
  %v1696 = vadd.f32 0.0, %v1695
  %v1697 = vpop.f32.mrb[0].mxu0
  %v1698 = vpop.f32.mrb[0].mxu0
  %v1699 = vadd.f32 0.0, %v1698
  %v1700 = vpop.f32.mrb[0].mxu0
  %1701 = vmatprep.mubr.bf16.mxu0 0
  %1702 = vmatmul.mubr.bf16.gmra.mrb[0].mxu0 %v1650
  %v1703 = vpop.f32.mrb[0].mxu0
  %v1704 = vadd.f32 0.0, %v1703
  %v1705 = vpop.f32.mrb[0].mxu0
  %v1706 = vpop.f32.mrb[0].mxu0
  %v1707 = vadd.f32 0.0, %v1706
  %v1708 = vpop.f32.mrb[0].mxu0
  %1709 = vmatprep.mubr.bf16.mxu0 0
  %1710 = vmatmul.mubr.bf16.gmra.mrb[0].mxu0 %v1653
  %v1711 = vpop.f32.mrb[0].mxu0
  %v1712 = vadd.f32 0.0, %v1711
  %v1713 = vpop.f32.mrb[0].mxu0
  %v1714 = vpop.f32.mrb[0].mxu0
  %v1715 = vadd.f32 0.0, %v1714
  %v1716 = vpop.f32.mrb[0].mxu0
  %1717 = vmatprep.mubr.bf16.mxu0 0
  %1718 = vmatmul.mubr.bf16.gmra.mrb[0].mxu0 %v1656
  %v1719 = vpop.f32.mrb[0].mxu0
  %v1720 = vadd.f32 0.0, %v1719
  %v1721 = vpop.f32.mrb[0].mxu0
  %v1722 = vpop.f32.mrb[0].mxu0
  %v1723 = vadd.f32 0.0, %v1722
  %v1724 = vpop.f32.mrb[0].mxu0
  %1725 = vmatprep.mubr.bf16.mxu0 0
  %1726 = vmatmul.mubr.bf16.gmra.mrb[0].mxu0 %v1659
  %v1727 = vpop.f32.mrb[0].mxu0
  %v1728 = vadd.f32 0.0, %v1727
  %v1729 = vpop.f32.mrb[0].mxu0
  %v1730 = vpop.f32.mrb[0].mxu0
  %v1731 = vpop.f32.mrb[0].mxu0
  %1732 = vdwg.mxu0
  %v1733 = vpack.c.bf16 %v1699, %v1696
  %v1734 = vpack.c.bf16 %v1707, %v1704
  %v1735 = vpack.c.bf16 %v1715, %v1712
  %v1736 = vpack.c.bf16 %v1723, %v1720
  %v1737 = vpack.c.bf16 %v1728, %v1728
  %v1739 = vsel %vm218, %v1734, 0
  %1741 = vmatprep.subr.bf16.mxu0 0
  %1742 = vmatpush1.bf16.msra.mxu0 %v1733
  %1743 = vmatprep.subr.bf16.mxu0 0
  %1744 = vmatpush1.bf16.msra.mxu0 %v1739
  %1745 = vmatprep.subr.bf16.mxu0 0
  %1746 = vmatpush1.bf16.msra.mxu0 0
  %1747 = vmatprep.subr.bf16.mxu0 0
  %1748 = vmatpush1.bf16.msra.mxu0 0
  %1749 = vmatprep.subr.bf16.mxu0 0
  %1750 = vmatpush1.bf16.msra.mxu0 0
  %1751 = vmatprep.subr.bf16.mxu0 0
  %1752 = vmatpush1.bf16.msra.mxu0 0
  %1753 = vmatprep.subr.bf16.mxu0 0
  %1754 = vmatpush1.bf16.msra.mxu0 0
  %1755 = vmatprep.subr.bf16.mxu0 0
  %1756 = vmatpush1.bf16.msra.mxu0 0
  %1757 = vmatprep.subr.bf16.mxu0 0
  %1758 = vmatpush1.bf16.msra.mxu0 0
  %1759 = vmatprep.subr.bf16.mxu0 0
  %1760 = vmatpush1.bf16.msra.mxu0 0
  %1761 = vmatprep.subr.bf16.mxu0 0
  %1762 = vmatpush1.bf16.msra.mxu0 0
  %1763 = vmatprep.subr.bf16.mxu0 0
  %1764 = vmatpush1.bf16.msra.mxu0 0
  %1765 = vmatprep.subr.bf16.mxu0 0
  %1766 = vmatpush1.bf16.msra.mxu0 0
  %1767 = vmatprep.subr.bf16.mxu0 0
  %1768 = vmatpush1.bf16.msra.mxu0 0
  %1769 = vmatprep.subr.bf16.mxu0 0
  %1770 = vmatpush1.bf16.msra.mxu0 0
  %1771 = vmatprep.subr.bf16.mxu0 0
  %1772 = vmatpush1.bf16.msra.mxu0 0
  %1773 = vmatprep.mubr.bf16.mxu0 0
  %1774 = vmatmul.mubr.bf16.gmra.mrb[0].mxu0 %v836
  %v1775 = vpop.f32.mrb[0].mxu0
  %v1776 = vadd.f32 0.0, %v1775
  %v1777 = vpop.f32.mrb[0].mxu0
  %v1778 = vpop.f32.mrb[0].mxu0
  %v1779 = vadd.f32 0.0, %v1778
  %v1780 = vpop.f32.mrb[0].mxu0
  %1781 = vmatprep.mubr.bf16.mxu0 0
  %1782 = vmatmul.mubr.bf16.gmra.mrb[0].mxu0 %v839
  %v1783 = vpop.f32.mrb[0].mxu0
  %v1784 = vadd.f32 0.0, %v1783
  %v1785 = vpop.f32.mrb[0].mxu0
  %v1786 = vpop.f32.mrb[0].mxu0
  %v1787 = vpop.f32.mrb[0].mxu0
  %1788 = vdwg.mxu0
  %v1791 = vrot.slane %v1734, 4
  %v1792 = vrot.slane %v1735, 4
  %v1793 = vsel %vm894, %v1791, %v1792
  %v1796 = vsel %vm218, %v1792, 0
  %1798 = vmatprep.subr.bf16.mxu0 0
  %1799 = vmatpush1.bf16.msra.mxu0 %v1793
  %1800 = vmatprep.subr.bf16.mxu0 0
  %1801 = vmatpush1.bf16.msra.mxu0 %v1796
  %1802 = vmatprep.subr.bf16.mxu0 0
  %1803 = vmatpush1.bf16.msra.mxu0 0
  %1804 = vmatprep.subr.bf16.mxu0 0
  %1805 = vmatpush1.bf16.msra.mxu0 0
  %1806 = vmatprep.subr.bf16.mxu0 0
  %1807 = vmatpush1.bf16.msra.mxu0 0
  %1808 = vmatprep.subr.bf16.mxu0 0
  %1809 = vmatpush1.bf16.msra.mxu0 0
  %1810 = vmatprep.subr.bf16.mxu0 0
  %1811 = vmatpush1.bf16.msra.mxu0 0
  %1812 = vmatprep.subr.bf16.mxu0 0
  %1813 = vmatpush1.bf16.msra.mxu0 0
  %1814 = vmatprep.subr.bf16.mxu0 0
  %1815 = vmatpush1.bf16.msra.mxu0 0
  %1816 = vmatprep.subr.bf16.mxu0 0
  %1817 = vmatpush1.bf16.msra.mxu0 0
  %1818 = vmatprep.subr.bf16.mxu0 0
  %1819 = vmatpush1.bf16.msra.mxu0 0
  %1820 = vmatprep.subr.bf16.mxu0 0
  %1821 = vmatpush1.bf16.msra.mxu0 0
  %1822 = vmatprep.subr.bf16.mxu0 0
  %1823 = vmatpush1.bf16.msra.mxu0 0
  %1824 = vmatprep.subr.bf16.mxu0 0
  %1825 = vmatpush1.bf16.msra.mxu0 0
  %1826 = vmatprep.subr.bf16.mxu0 0
  %1827 = vmatpush1.bf16.msra.mxu0 0
  %1828 = vmatprep.subr.bf16.mxu0 0
  %1829 = vmatpush1.bf16.msra.mxu0 0
  %1830 = vmatprep.mubr.bf16.mxu0 0
  %1831 = vmatmul.mubr.bf16.gmra.mrb[0].mxu0 %v836
  %v1832 = vpop.f32.mrb[0].mxu0
  %v1833 = vadd.f32 0.0, %v1832
  %v1834 = vpop.f32.mrb[0].mxu0
  %v1835 = vpop.f32.mrb[0].mxu0
  %v1836 = vadd.f32 0.0, %v1835
  %v1837 = vpop.f32.mrb[0].mxu0
  %1838 = vmatprep.mubr.bf16.mxu0 0
  %1839 = vmatmul.mubr.bf16.gmra.mrb[0].mxu0 %v839
  %v1840 = vpop.f32.mrb[0].mxu0
  %v1841 = vadd.f32 0.0, %v1840
  %v1842 = vpop.f32.mrb[0].mxu0
  %v1843 = vpop.f32.mrb[0].mxu0
  %v1844 = vpop.f32.mrb[0].mxu0
  %1845 = vdwg.mxu0
  %v1847 = vsel %vm218, %v1737, 0
  %1849 = vmatprep.subr.bf16.mxu0 0
  %1850 = vmatpush1.bf16.msra.mxu0 %v1736
  %1851 = vmatprep.subr.bf16.mxu0 0
  %1852 = vmatpush1.bf16.msra.mxu0 %v1847
  %1853 = vmatprep.subr.bf16.mxu0 0
  %1854 = vmatpush1.bf16.msra.mxu0 0
  %1855 = vmatprep.subr.bf16.mxu0 0
  %1856 = vmatpush1.bf16.msra.mxu0 0
  %1857 = vmatprep.subr.bf16.mxu0 0
  %1858 = vmatpush1.bf16.msra.mxu0 0
  %1859 = vmatprep.subr.bf16.mxu0 0
  %1860 = vmatpush1.bf16.msra.mxu0 0
  %1861 = vmatprep.subr.bf16.mxu0 0
  %1862 = vmatpush1.bf16.msra.mxu0 0
  %1863 = vmatprep.subr.bf16.mxu0 0
  %1864 = vmatpush1.bf16.msra.mxu0 0
  %1865 = vmatprep.subr.bf16.mxu0 0
  %1866 = vmatpush1.bf16.msra.mxu0 0
  %1867 = vmatprep.subr.bf16.mxu0 0
  %1868 = vmatpush1.bf16.msra.mxu0 0
  %1869 = vmatprep.subr.bf16.mxu0 0
  %1870 = vmatpush1.bf16.msra.mxu0 0
  %1871 = vmatprep.subr.bf16.mxu0 0
  %1872 = vmatpush1.bf16.msra.mxu0 0
  %1873 = vmatprep.subr.bf16.mxu0 0
  %1874 = vmatpush1.bf16.msra.mxu0 0
  %1875 = vmatprep.subr.bf16.mxu0 0
  %1876 = vmatpush1.bf16.msra.mxu0 0
  %1877 = vmatprep.subr.bf16.mxu0 0
  %1878 = vmatpush1.bf16.msra.mxu0 0
  %1879 = vmatprep.subr.bf16.mxu0 0
  %1880 = vmatpush1.bf16.msra.mxu0 0
  %1881 = vmatprep.mubr.bf16.mxu0 0
  %1882 = vmatmul.mubr.bf16.gmra.mrb[0].mxu0 %v836
  %v1883 = vpop.f32.mrb[0].mxu0
  %v1884 = vadd.f32 0.0, %v1883
  %v1885 = vpop.f32.mrb[0].mxu0
  %v1886 = vpop.f32.mrb[0].mxu0
  %v1887 = vadd.f32 0.0, %v1886
  %v1888 = vpop.f32.mrb[0].mxu0
  %1889 = vmatprep.mubr.bf16.mxu0 0
  %1890 = vmatmul.mubr.bf16.gmra.mrb[0].mxu0 %v839
  %v1891 = vpop.f32.mrb[0].mxu0
  %v1892 = vadd.f32 0.0, %v1891
  %v1893 = vpop.f32.mrb[0].mxu0
  %v1894 = vpop.f32.mrb[0].mxu0
  %v1895 = vpop.f32.mrb[0].mxu0
  %1896 = vdwg.mxu0
  %v1897 = vadd.f32 %v1615, %v1776
  %v1898 = vadd.f32 %v1616, %v1779
  %v1899 = vadd.f32 %v1617, %v1784
  %v1900 = vadd.f32 %v1618, %v1833
  %v1901 = vadd.f32 %v1619, %v1836
  %v1902 = vadd.f32 %v1620, %v1841
  %v1903 = vadd.f32 %v1621, %v1884
  %v1904 = vadd.f32 %v1622, %v1887
  %v1905 = vadd.f32 %v1623, %v1892
  %s1906 = scalar_lea.vmem %s9, 3
  %v1907 = vld [vmem:[%s1906] sm:$0x1]
  %v1909 = vlaneseq
  %v1910 = vshrl.u32 %v1909, 7
  %v1911 = vsub.s32 0, %v1910
  %v1912 = vrot.slane %v1907, %v1911
  %v1914 = vadd.f32 %v1897, %v1912
  %v1915 = vadd.f32 %v1898, %v1912
  %v1916 = vadd.f32 %v1899, %v1912
  %v1917 = vadd.f32 %v1900, %v1912
  %v1918 = vadd.f32 %v1901, %v1912
  %v1919 = vadd.f32 %v1902, %v1912
  %v1920 = vadd.f32 %v1903, %v1912
  %v1921 = vadd.f32 %v1904, %v1912
  %v1922 = vadd.f32 %v1905, %v1912
  %1926 = vrot.lane.b32.xlu0 %v1914, 32
  %v1927 = vpop.permute.xlu0 %1926
  %1928 = vrot.lane.b32.xlu0 %v1915, 32
  %v1929 = vpop.permute.xlu0 %1928
  %1930 = vrot.lane.b32.xlu0 %v1916, 32
  %v1931 = vpop.permute.xlu0 %1930
  %1938 = vrot.lane.b32.xlu0 %v1917, 64
  %v1939 = vpop.permute.xlu0 %1938
  %1940 = vrot.lane.b32.xlu0 %v1918, 64
  %v1941 = vpop.permute.xlu0 %1940
  %1942 = vrot.lane.b32.xlu0 %v1919, 64
  %v1943 = vpop.permute.xlu0 %1942
  %1950 = vrot.lane.b32.xlu0 %v1920, 96
  %v1951 = vpop.permute.xlu0 %1950
  %1952 = vrot.lane.b32.xlu0 %v1921, 96
  %v1953 = vpop.permute.xlu0 %1952
  %1954 = vrot.lane.b32.xlu0 %v1922, 96
  %v1955 = vpop.permute.xlu0 %1954
  %v1959 = vsel %vm64, %v525, %v1927
  %v1960 = vsel %vm64, %v528, %v1929
  %v1961 = vsel %vm64, %v533, %v1931
  %vm1962 = vcmask 523264
  %v1963 = vsel %vm1962, %v1959, %v1939
  %v1964 = vsel %vm1962, %v1960, %v1941
  %v1965 = vsel %vm1962, %v1961, %v1943
  %vm1966 = vcmask 785408
  %v1967 = vsel %vm1966, %v1963, %v1951
  %v1968 = vsel %vm1966, %v1964, %v1953
  %v1969 = vsel %vm1966, %v1965, %v1955
  %1970 = vst [vmem:[%s10] sm:$0xff] %v1967
  %1971 = vst.msk [vmem:[%s10 + $0x8] sm:$0xff] %vm64, %v712
  %1972 = vst [vmem:[%s10 + $0x10] sm:$0xff] %v1968
  %1973 = vst.msk [vmem:[%s10 + $0x18] sm:$0xff] %vm64, %v713
  %1974 = vst [vmem:[%s10 + $0x20] sm:$0xff] %v1969
  %1975 = vst.msk [vmem:[%s10 + $0x28] sm:$0xff] %vm64, %v714
  // Predicated region
  $region42: #{dense.1} parent=0 // pred_check
    _
  $region43: #{dense.1} parent=0 // pred_check_branch
    %1977 = sbr.rel (0) target = $region45
  $region44: #{dense.1} parent=0 // pred_region
    _
  $region45: #{dense.1} parent=0 // pred_fallthru
    _
  // Predicated region
  $region46: #{dense.1} parent=0 // pred_check
    _
  $region47: #{dense.1} parent=0 // pred_check_branch
    %1979 = sbr.rel (0) target = $region49
  $region48: #{dense.1} parent=0 // pred_region
    _
  $region49: #{dense.1} parent=0 // pred_fallthru
    _

</llo_original>
